<compile_context>
chip_gen: v7x
topology: tpu7x:2x2x1
jax: 0.10.0
libtpu: 0.0.40
codegen_flags: <defaults>
</compile_context>

<pallas_src>
import jax
import jax.numpy as jnp
from jax.experimental import pallas as pl
from jax.experimental.pallas import tpu as pltpu

NEG_INF = -1e30
BB = 8  # decode streams per grid block (sublane-full); raise to 128+ for real MXU use


def _round_up(x, m):
    return (x + m - 1) // m * m


def _make_decoder_kernel(true_l, true_v):
    """One decode step for one batch-block of BB streams (all dims 128-padded)."""

    def kernel(emb_ref, hid0_ref, enc_ref,
               attn_we_ref, attn_wh_ref, attn_b_ref,
               comb_we_ref, comb_wa_ref, comb_b_ref,
               wih_t_ref, bih_ref, whh_t_ref, bhh_ref,
               out_wt_ref, out_b_ref,
               logp_ref, hfinal_ref, aw_ref,
               h_scr):
        t = pl.program_id(1)                     # decode-step axis (sequential)

        @pl.when(t == 0)
        def _init_hidden():
            h_scr[...] = hid0_ref[...]

        x = emb_ref[0]                           # (BB, Hp) dropout(embedding) == identity (eval)
        h = h_scr[...]                           # (BB, Hp) carried hidden state
        bb, hp = x.shape
        lp = attn_b_ref.shape[1]
        vp = out_b_ref.shape[1]

        # ---- attn_weights = softmax(Linear_{2H->L}([x, h])) ----
        # split-weight form: x@We + h@Wh + b   (no lane-axis concatenate)
        a = (jnp.dot(x, attn_we_ref[...], preferred_element_type=jnp.float32)
             + jnp.dot(h, attn_wh_ref[...], preferred_element_type=jnp.float32)
             + attn_b_ref[...])                                        # (BB, Lp)
        a = jnp.where(jax.lax.broadcasted_iota(jnp.int32, (bb, lp), 1) < true_l,
                      a, NEG_INF)
        a = a - jnp.max(a, axis=1, keepdims=True)
        a_exp = jnp.exp(a)
        aw = a_exp * pl.reciprocal(jnp.sum(a_exp, axis=1, keepdims=True),
                                   approx=True)                        # (BB, Lp)
        aw_ref[0] = aw

        # ---- attn_applied = attn_weights @ encoder_outputs ----
        attn_applied = jnp.dot(aw, enc_ref[...],
                               preferred_element_type=jnp.float32)     # (BB, Hp)

        # ---- attn_combine + ReLU (split weights, no concatenate) ----
        comb = (jnp.dot(x, comb_we_ref[...], preferred_element_type=jnp.float32)
                + jnp.dot(attn_applied, comb_wa_ref[...],
                          preferred_element_type=jnp.float32)
                + comb_b_ref[...])
        g = jnp.maximum(comb, 0.0)                                     # (BB, Hp)

        # ---- single-step GRU (PyTorch gate order r, z, n); 128-aligned gate slices ----
        gi = jnp.dot(g, wih_t_ref[...], preferred_element_type=jnp.float32) + bih_ref[...]
        gh = jnp.dot(h, whh_t_ref[...], preferred_element_type=jnp.float32) + bhh_ref[...]
        r = jax.nn.sigmoid(gi[:, 0:hp] + gh[:, 0:hp])
        z = jax.nn.sigmoid(gi[:, hp:2 * hp] + gh[:, hp:2 * hp])
        n = jnp.tanh(gi[:, 2 * hp:3 * hp] + r * gh[:, 2 * hp:3 * hp])
        h_new = (1.0 - z) * n + z * h                                  # (BB, Hp)
        h_scr[...] = h_new
        hfinal_ref[...] = h_new

        # ---- output = log_softmax(Linear_{H->V}(h_new)) over the real vocab ----
        o = jnp.dot(h_new, out_wt_ref[...],
                    preferred_element_type=jnp.float32) + out_b_ref[...]
        o = jnp.where(jax.lax.broadcasted_iota(jnp.int32, (bb, vp), 1) < true_v,
                      o, NEG_INF)
        o_max = jnp.max(o, axis=1, keepdims=True)
        lse = jnp.log(jnp.sum(jnp.exp(o - o_max), axis=1, keepdims=True)) + o_max
        logp_ref[0] = o - lse

    return kernel


@jax.jit
def decoder_decode(params, tokens, hidden0, encoder_outputs):
    """Fused T-step attention-decoder forward (teacher-forced token sequence).

    tokens:          (T, B) int32  — input token per step per decode stream
    hidden0:         (1, B, H) f32 — initial GRU hidden state
    encoder_outputs: (L, H) f32    — shared by all B streams (e.g. beams)

    Step t of stream b reproduces Decoder.forward(tokens[t, b], hidden, enc)
    applied sequentially with the carried hidden state.
    Returns (log_probs (T,B,V), hidden (1,B,H), attn_weights (T,B,L)).
    """
    T, B = tokens.shape
    H = hidden0.shape[-1]
    L = encoder_outputs.shape[0]
    V = params["embedding"].shape[0]
    Hp, Lp, Vp = _round_up(H, 128), _round_up(L, 128), _round_up(V, 128)
    assert B % BB == 0
    NB = B // BB
    f32 = jnp.float32

    def pad2(a, rows, cols):
        a = a.astype(f32)
        return jnp.pad(a, ((0, rows - a.shape[0]), (0, cols - a.shape[1])))

    def pad_gates(w, rows):
        # pad each of the fused (r|z|n) gate blocks separately so every gate
        # occupies a full 128-lane-aligned block of the padded matrix.
        return jnp.concatenate(
            [pad2(g, rows, Hp) for g in jnp.split(w.astype(f32), 3, axis=1)], axis=1)

    # Single embedding gather for the whole decode; step rows are streamed into
    # VMEM one block at a time by the BlockSpec pipeline.
    embs = params["embedding"][tokens].astype(f32)                     # (T, B, H)
    embs_p = jnp.pad(embs, ((0, 0), (0, 0), (0, Hp - H)))
    hid0_p = pad2(hidden0[0], B, Hp)                                   # (B, Hp)
    enc_p = pad2(encoder_outputs, Lp, Hp)                              # (Lp, Hp)

    attn_we = pad2(params["attn_we"], Hp, Lp)
    attn_wh = pad2(params["attn_wh"], Hp, Lp)
    attn_b = pad2(params["attn_b"], 1, Lp)
    comb_we = pad2(params["comb_we"], Hp, Hp)
    comb_wa = pad2(params["comb_wa"], Hp, Hp)
    comb_b = pad2(params["comb_b"], 1, Hp)
    wih_t = pad_gates(params["wih_t"], Hp)
    whh_t = pad_gates(params["whh_t"], Hp)
    bih = pad_gates(params["bih"], 1)
    bhh = pad_gates(params["bhh"], 1)
    out_wt = pad2(params["out_wt"], Hp, Vp)
    out_b = pad2(params["out_b"], 1, Vp)

    # constant index map -> tensor is DMA'd once and stays resident in VMEM
    resident = lambda shape: pl.BlockSpec(shape, lambda b, t: (0,) * len(shape))

    logp_p, hfin_p, aw_p = pl.pallas_call(
        _make_decoder_kernel(L, V),
        grid=(NB, T),
        in_specs=[
            pl.BlockSpec((1, BB, Hp), lambda b, t: (t, b, 0)),   # embedded tokens (streamed)
            pl.BlockSpec((BB, Hp), lambda b, t: (b, 0)),         # initial hidden
            resident((Lp, Hp)),                                  # encoder outputs
            resident((Hp, Lp)), resident((Hp, Lp)), resident((1, Lp)),   # attn
            resident((Hp, Hp)), resident((Hp, Hp)), resident((1, Hp)),   # attn_combine
            resident((Hp, 3 * Hp)), resident((1, 3 * Hp)),               # GRU W_ih / b_ih
            resident((Hp, 3 * Hp)), resident((1, 3 * Hp)),               # GRU W_hh / b_hh
            resident((Hp, Vp)), resident((1, Vp)),                       # out
        ],
        out_specs=(
            pl.BlockSpec((1, BB, Vp), lambda b, t: (t, b, 0)),   # per-step log-probs
            pl.BlockSpec((BB, Hp), lambda b, t: (b, 0)),         # final hidden
            pl.BlockSpec((1, BB, Lp), lambda b, t: (t, b, 0)),   # per-step attn weights
        ),
        out_shape=(
            jax.ShapeDtypeStruct((T, B, Vp), f32),
            jax.ShapeDtypeStruct((B, Hp), f32),
            jax.ShapeDtypeStruct((T, B, Lp), f32),
        ),
        scratch_shapes=[pltpu.VMEM((BB, Hp), f32)],               # carried GRU hidden state
        compiler_params=pltpu.CompilerParams(
            dimension_semantics=("parallel", "arbitrary")),
    )(embs_p, hid0_p, enc_p,
      attn_we, attn_wh, attn_b,
      comb_we, comb_wa, comb_b,
      wih_t, bih, whh_t, bhh,
      out_wt, out_b)

    return (logp_p[:, :, :V],
            hfin_p[jnp.newaxis, :, :H],
            aw_p[:, :, :L])


def init_params(key, hidden_size, output_size, max_length):
    H, V, L = hidden_size, output_size, max_length
    ks = jax.random.split(key, 13)

    def uni(k, shape, fan_in):
        bound = 1.0 / float(fan_in) ** 0.5
        return jax.random.uniform(k, shape, jnp.float32, -bound, bound)

    return {
        "embedding": jax.random.normal(ks[0], (V, H), jnp.float32),
        # attn: Linear(2H -> L), pre-transposed and split into x / h halves
        "attn_we": uni(ks[1], (H, L), 2 * H),
        "attn_wh": uni(ks[2], (H, L), 2 * H),
        "attn_b":  uni(ks[3], (1, L), 2 * H),
        # attn_combine: Linear(2H -> H), split halves
        "comb_we": uni(ks[4], (H, H), 2 * H),
        "comb_wa": uni(ks[5], (H, H), 2 * H),
        "comb_b":  uni(ks[6], (1, H), 2 * H),
        # GRU, pre-transposed to (in, 3H), gate order (r, z, n)
        "wih_t": uni(ks[7], (H, 3 * H), H),
        "bih":   uni(ks[8], (1, 3 * H), H),
        "whh_t": uni(ks[9], (H, 3 * H), H),
        "bhh":   uni(ks[10], (1, 3 * H), H),
        # out: Linear(H -> V)
        "out_wt": uni(ks[11], (H, V), H),
        "out_b":  uni(ks[12], (1, V), H),
    }


def decoder_reference(params, tokens, hidden0, encoder_outputs):
    """Pure-JAX reference: Decoder.forward applied step by step (eval-mode dropout)."""
    H = hidden0.shape[-1]
    h = hidden0[0].astype(jnp.float32)
    logps, aws = [], []
    for t in range(tokens.shape[0]):
        x = params["embedding"][tokens[t]].astype(jnp.float32)
        a = x @ params["attn_we"] + h @ params["attn_wh"] + params["attn_b"]
        aw = jax.nn.softmax(a, axis=1)
        attn_applied = aw @ encoder_outputs
        g = jnp.maximum(x @ params["comb_we"] + attn_applied @ params["comb_wa"]
                        + params["comb_b"], 0.0)
        gi = g @ params["wih_t"] + params["bih"]
        gh = h @ params["whh_t"] + params["bhh"]
        r = jax.nn.sigmoid(gi[:, :H] + gh[:, :H])
        z = jax.nn.sigmoid(gi[:, H:2 * H] + gh[:, H:2 * H])
        n = jnp.tanh(gi[:, 2 * H:] + r * gh[:, 2 * H:])
        h = (1.0 - z) * n + z * h
        logps.append(jax.nn.log_softmax(h @ params["out_wt"] + params["out_b"], axis=1))
        aws.append(aw)
    return jnp.stack(logps), h[jnp.newaxis], jnp.stack(aws)


if __name__ == "__main__":
    HIDDEN_SIZE = 64       # small, forward-consistent demo shapes
    OUTPUT_SIZE = 80       # vocab
    MAX_LENGTH = 20
    BATCH = 16             # decode streams (e.g. beams) sharing the encoder
    STEPS = 6              # fused decode steps (teacher forced)

    key = jax.random.PRNGKey(0)
    k_params, k_enc, k_tok = jax.random.split(key, 3)
    params = init_params(k_params, HIDDEN_SIZE, OUTPUT_SIZE, MAX_LENGTH)

    tokens = jax.random.randint(k_tok, (STEPS, BATCH), 0, OUTPUT_SIZE, dtype=jnp.int32)
    hidden0 = jnp.zeros((1, BATCH, HIDDEN_SIZE), jnp.float32)       # Decoder.initHidden()
    encoder_outputs = jax.random.normal(k_enc, (MAX_LENGTH, HIDDEN_SIZE), jnp.float32)

    logp, hidden, aw = decoder_decode(params, tokens, hidden0, encoder_outputs)
    jax.block_until_ready((logp, hidden, aw))

    assert logp.shape == (STEPS, BATCH, OUTPUT_SIZE)
    assert hidden.shape == (1, BATCH, HIDDEN_SIZE)
    assert aw.shape == (STEPS, BATCH, MAX_LENGTH)

    # correctness vs pure-JAX reference (loose tol covers MXU matmul precision
    # and pl.reciprocal(approx=True) in the attention softmax)
    ref_logp, ref_hidden, ref_aw = decoder_reference(params, tokens, hidden0, encoder_outputs)
    assert jnp.allclose(logp, ref_logp, rtol=5e-2, atol=5e-2)
    assert jnp.allclose(hidden, ref_hidden, rtol=5e-2, atol=5e-2)
    assert jnp.allclose(aw, ref_aw, rtol=5e-2, atol=5e-2)

    print("KERNEL_OK")
</pallas_src>

<mosaic_0001>
module attributes {stable_mosaic.version = 11 : i64} {
  func.func @kernel(%arg0: i32, %arg1: i32, %arg2: memref<1x8x128xf32, #tpu.memory_space<vmem>>, %arg3: memref<8x128xf32, #tpu.memory_space<vmem>>, %arg4: memref<128x128xf32, #tpu.memory_space<vmem>>, %arg5: memref<128x128xf32, #tpu.memory_space<vmem>>, %arg6: memref<128x128xf32, #tpu.memory_space<vmem>>, %arg7: memref<1x128xf32, #tpu.memory_space<vmem>>, %arg8: memref<128x128xf32, #tpu.memory_space<vmem>>, %arg9: memref<128x128xf32, #tpu.memory_space<vmem>>, %arg10: memref<1x128xf32, #tpu.memory_space<vmem>>, %arg11: memref<128x384xf32, #tpu.memory_space<vmem>>, %arg12: memref<1x384xf32, #tpu.memory_space<vmem>>, %arg13: memref<128x384xf32, #tpu.memory_space<vmem>>, %arg14: memref<1x384xf32, #tpu.memory_space<vmem>>, %arg15: memref<128x128xf32, #tpu.memory_space<vmem>>, %arg16: memref<1x128xf32, #tpu.memory_space<vmem>>, %arg17: memref<1x8x128xf32, #tpu.memory_space<vmem>>, %arg18: memref<8x128xf32, #tpu.memory_space<vmem>>, %arg19: memref<1x8x128xf32, #tpu.memory_space<vmem>>, %arg20: memref<8x128xf32, #tpu.memory_space<vmem>>) attributes {dimension_semantics = [#tpu.dimension_semantics<parallel>, #tpu.dimension_semantics<arbitrary>], iteration_bounds = array<i64: 2, 6>, scalar_prefetch = 0 : i64, scratch_operands = 1 : i64, tpu.core_type = #tpu.core_type<tc>, window_params = [{transform_indices = @transform_0, window_bounds = array<i64: 1, 8, 128>}, {transform_indices = @transform_1, window_bounds = array<i64: 8, 128>}, {pipeline_mode = #tpu.pipeline_mode<synchronous>, transform_indices = @transform_2, window_bounds = array<i64: 128, 128>}, {pipeline_mode = #tpu.pipeline_mode<synchronous>, transform_indices = @transform_3, window_bounds = array<i64: 128, 128>}, {pipeline_mode = #tpu.pipeline_mode<synchronous>, transform_indices = @transform_4, window_bounds = array<i64: 128, 128>}, {pipeline_mode = #tpu.pipeline_mode<synchronous>, transform_indices = @transform_5, window_bounds = array<i64: 1, 128>}, {pipeline_mode = #tpu.pipeline_mode<synchronous>, transform_indices = @transform_6, window_bounds = array<i64: 128, 128>}, {pipeline_mode = #tpu.pipeline_mode<synchronous>, transform_indices = @transform_7, window_bounds = array<i64: 128, 128>}, {pipeline_mode = #tpu.pipeline_mode<synchronous>, transform_indices = @transform_8, window_bounds = array<i64: 1, 128>}, {pipeline_mode = #tpu.pipeline_mode<synchronous>, transform_indices = @transform_9, window_bounds = array<i64: 128, 384>}, {pipeline_mode = #tpu.pipeline_mode<synchronous>, transform_indices = @transform_10, window_bounds = array<i64: 1, 384>}, {pipeline_mode = #tpu.pipeline_mode<synchronous>, transform_indices = @transform_11, window_bounds = array<i64: 128, 384>}, {pipeline_mode = #tpu.pipeline_mode<synchronous>, transform_indices = @transform_12, window_bounds = array<i64: 1, 384>}, {pipeline_mode = #tpu.pipeline_mode<synchronous>, transform_indices = @transform_13, window_bounds = array<i64: 128, 128>}, {pipeline_mode = #tpu.pipeline_mode<synchronous>, transform_indices = @transform_14, window_bounds = array<i64: 1, 128>}, {transform_indices = @transform_15, window_bounds = array<i64: 1, 8, 128>}, {transform_indices = @transform_16, window_bounds = array<i64: 8, 128>}, {transform_indices = @transform_17, window_bounds = array<i64: 1, 8, 128>}]} {
    %c0_i32 = arith.constant 0 : i32
    %0 = arith.cmpi eq, %arg1, %c0_i32 : i32
    %1 = arith.extui %0 : i1 to i32
    %c0_i32_0 = arith.constant 0 : i32
    %2 = arith.cmpi ne, %1, %c0_i32_0 : i32
    scf.if %2 {
      %c0_58 = arith.constant 0 : index
      %c0_59 = arith.constant 0 : index
      %106 = vector.load %arg3[%c0_58, %c0_59] : memref<8x128xf32, #tpu.memory_space<vmem>>, vector<8x128xf32>
      %c0_60 = arith.constant 0 : index
      %c0_61 = arith.constant 0 : index
      %107 = vector.load %arg20[%c0_60, %c0_61] : memref<8x128xf32, #tpu.memory_space<vmem>>, vector<8x128xf32>
      tpu.vector_store %arg20[%c0_60, %c0_61], %106 {strides = array<i32>} : memref<8x128xf32, #tpu.memory_space<vmem>>, vector<8x128xf32>,
    } else {
    }
    %c0 = arith.constant 0 : index
    %c0_1 = arith.constant 0 : index
    %c0_2 = arith.constant 0 : index
    %3 = vector.load %arg2[%c0, %c0_1, %c0_2] : memref<1x8x128xf32, #tpu.memory_space<vmem>>, vector<1x8x128xf32>
    %4 = vector.shape_cast %3 : vector<1x8x128xf32> to vector<8x128xf32>
    %c0_3 = arith.constant 0 : index
    %c0_4 = arith.constant 0 : index
    %5 = vector.load %arg20[%c0_3, %c0_4] : memref<8x128xf32, #tpu.memory_space<vmem>>, vector<8x128xf32>
    %c0_5 = arith.constant 0 : index
    %c0_6 = arith.constant 0 : index
    %6 = vector.load %arg5[%c0_5, %c0_6] : memref<128x128xf32, #tpu.memory_space<vmem>>, vector<128x128xf32>
    %cst = arith.constant dense<0.000000e+00> : vector<8x128xf32>
    %7 = tpu.matmul %4, %6, %cst {dimension_numbers = #tpu.dot_dimension_numbers<[1], [0], [0], [1], [0, 0, 1, 1], [], []>} : vector<8x128xf32>, vector<128x128xf32>, vector<8x128xf32> -> vector<8x128xf32>
    %c0_7 = arith.constant 0 : index
    %c0_8 = arith.constant 0 : index
    %8 = vector.load %arg6[%c0_7, %c0_8] : memref<128x128xf32, #tpu.memory_space<vmem>>, vector<128x128xf32>
    %cst_9 = arith.constant dense<0.000000e+00> : vector<8x128xf32>
    %9 = tpu.matmul %5, %8, %cst_9 {dimension_numbers = #tpu.dot_dimension_numbers<[1], [0], [0], [1], [0, 0, 1, 1], [], []>} : vector<8x128xf32>, vector<128x128xf32>, vector<8x128xf32> -> vector<8x128xf32>
    %10 = arith.addf %7, %9 : vector<8x128xf32>
    %c0_10 = arith.constant 0 : index
    %c0_11 = arith.constant 0 : index
    %11 = vector.load %arg7[%c0_10, %c0_11] : memref<1x128xf32, #tpu.memory_space<vmem>>, vector<1x128xf32>
    %12 = vector.broadcast %11 : vector<1x128xf32> to vector<8x128xf32>
    %13 = arith.addf %10, %12 : vector<8x128xf32>
    %14 = tpu.iota {dimensions = array<i32: 1>} : vector<8x128xi32>
    %c20_i32 = arith.constant 20 : i32
    %15 = vector.broadcast %c20_i32 : i32 to vector<8x128xi32>
    %16 = arith.cmpi slt, %14, %15 : vector<8x128xi32>
    %cst_12 = arith.constant -1.000000e+30 : f32
    %17 = vector.broadcast %cst_12 : f32 to vector<8x128xf32>
    %18 = arith.select %16, %13, %17 : vector<8x128xi1>, vector<8x128xf32>
    %cst_13 = arith.constant dense<0xFF800000> : vector<8xf32>
    %19 = vector.multi_reduction <maximumf>, %18, %cst_13 [1] : vector<8x128xf32> to vector<8xf32>
    %20 = vector.shape_cast %19 : vector<8xf32> to vector<8x1xf32>
    %21 = vector.broadcast %20 : vector<8x1xf32> to vector<8x128xf32>
    %22 = arith.subf %18, %21 : vector<8x128xf32>
    %23 = math.exp %22 : vector<8x128xf32>
    %cst_14 = arith.constant dense<0.000000e+00> : vector<8xf32>
    %24 = vector.multi_reduction <add>, %23, %cst_14 [1] : vector<8x128xf32> to vector<8xf32>
    %25 = vector.shape_cast %24 : vector<8xf32> to vector<8x1xf32>
    %26 = tpu.reciprocal %25 {approx = true} : vector<8x1xf32> -> vector<8x1xf32>
    %27 = vector.broadcast %26 : vector<8x1xf32> to vector<8x128xf32>
    %28 = arith.mulf %23, %27 : vector<8x128xf32>
    %c0_15 = arith.constant 0 : index
    %c0_16 = arith.constant 0 : index
    %c0_17 = arith.constant 0 : index
    %29 = vector.load %arg19[%c0_15, %c0_16, %c0_17] : memref<1x8x128xf32, #tpu.memory_space<vmem>>, vector<1x8x128xf32>
    %30 = vector.shape_cast %29 : vector<1x8x128xf32> to vector<8x128xf32>
    %31 = vector.shape_cast %28 : vector<8x128xf32> to vector<1x8x128xf32>
    tpu.vector_store %arg19[%c0_15, %c0_16, %c0_17], %31 {strides = array<i32>} : memref<1x8x128xf32, #tpu.memory_space<vmem>>, vector<1x8x128xf32>,
    %c0_18 = arith.constant 0 : index
    %c0_19 = arith.constant 0 : index
    %32 = vector.load %arg4[%c0_18, %c0_19] : memref<128x128xf32, #tpu.memory_space<vmem>>, vector<128x128xf32>
    %cst_20 = arith.constant dense<0.000000e+00> : vector<8x128xf32>
    %33 = tpu.matmul %28, %32, %cst_20 {dimension_numbers = #tpu.dot_dimension_numbers<[1], [0], [0], [1], [0, 0, 1, 1], [], []>} : vector<8x128xf32>, vector<128x128xf32>, vector<8x128xf32> -> vector<8x128xf32>
    %c0_21 = arith.constant 0 : index
    %c0_22 = arith.constant 0 : index
    %34 = vector.load %arg8[%c0_21, %c0_22] : memref<128x128xf32, #tpu.memory_space<vmem>>, vector<128x128xf32>
    %cst_23 = arith.constant dense<0.000000e+00> : vector<8x128xf32>
    %35 = tpu.matmul %4, %34, %cst_23 {dimension_numbers = #tpu.dot_dimension_numbers<[1], [0], [0], [1], [0, 0, 1, 1], [], []>} : vector<8x128xf32>, vector<128x128xf32>, vector<8x128xf32> -> vector<8x128xf32>
    %c0_24 = arith.constant 0 : index
    %c0_25 = arith.constant 0 : index
    %36 = vector.load %arg9[%c0_24, %c0_25] : memref<128x128xf32, #tpu.memory_space<vmem>>, vector<128x128xf32>
    %cst_26 = arith.constant dense<0.000000e+00> : vector<8x128xf32>
    %37 = tpu.matmul %33, %36, %cst_26 {dimension_numbers = #tpu.dot_dimension_numbers<[1], [0], [0], [1], [0, 0, 1, 1], [], []>} : vector<8x128xf32>, vector<128x128xf32>, vector<8x128xf32> -> vector<8x128xf32>
    %38 = arith.addf %35, %37 : vector<8x128xf32>
    %c0_27 = arith.constant 0 : index
    %c0_28 = arith.constant 0 : index
    %39 = vector.load %arg10[%c0_27, %c0_28] : memref<1x128xf32, #tpu.memory_space<vmem>>, vector<1x128xf32>
    %40 = vector.broadcast %39 : vector<1x128xf32> to vector<8x128xf32>
    %41 = arith.addf %38, %40 : vector<8x128xf32>
    %cst_29 = arith.constant 0.000000e+00 : f32
    %42 = vector.broadcast %cst_29 : f32 to vector<8x128xf32>
    %43 = arith.maximumf %41, %42 : vector<8x128xf32>
    %c0_30 = arith.constant 0 : index
    %c0_31 = arith.constant 0 : index
    %44 = vector.load %arg11[%c0_30, %c0_31] : memref<128x384xf32, #tpu.memory_space<vmem>>, vector<128x384xf32>
    %cst_32 = arith.constant dense<0.000000e+00> : vector<8x384xf32>
    %45 = tpu.matmul %43, %44, %cst_32 {dimension_numbers = #tpu.dot_dimension_numbers<[1], [0], [0], [1], [0, 0, 1, 1], [], []>} : vector<8x128xf32>, vector<128x384xf32>, vector<8x384xf32> -> vector<8x384xf32>
    %c0_33 = arith.constant 0 : index
    %c0_34 = arith.constant 0 : index
    %46 = vector.load %arg12[%c0_33, %c0_34] : memref<1x384xf32, #tpu.memory_space<vmem>>, vector<1x384xf32>
    %47 = vector.broadcast %46 : vector<1x384xf32> to vector<8x384xf32>
    %48 = arith.addf %45, %47 : vector<8x384xf32>
    %c0_35 = arith.constant 0 : index
    %c0_36 = arith.constant 0 : index
    %49 = vector.load %arg13[%c0_35, %c0_36] : memref<128x384xf32, #tpu.memory_space<vmem>>, vector<128x384xf32>
    %cst_37 = arith.constant dense<0.000000e+00> : vector<8x384xf32>
    %50 = tpu.matmul %5, %49, %cst_37 {dimension_numbers = #tpu.dot_dimension_numbers<[1], [0], [0], [1], [0, 0, 1, 1], [], []>} : vector<8x128xf32>, vector<128x384xf32>, vector<8x384xf32> -> vector<8x384xf32>
    %c0_38 = arith.constant 0 : index
    %c0_39 = arith.constant 0 : index
    %51 = vector.load %arg14[%c0_38, %c0_39] : memref<1x384xf32, #tpu.memory_space<vmem>>, vector<1x384xf32>
    %52 = vector.broadcast %51 : vector<1x384xf32> to vector<8x384xf32>
    %53 = arith.addf %50, %52 : vector<8x384xf32>
    %54 = vector.extract_strided_slice %48 {offsets = [0, 0], sizes = [8, 128], strides = [1, 1]} : vector<8x384xf32> to vector<8x128xf32>
    %55 = vector.extract_strided_slice %53 {offsets = [0, 0], sizes = [8, 128], strides = [1, 1]} : vector<8x384xf32> to vector<8x128xf32>
    %56 = arith.addf %54, %55 : vector<8x128xf32>
    %57 = arith.negf %56 : vector<8x128xf32>
    %58 = math.exp %57 : vector<8x128xf32>
    %cst_40 = arith.constant 1.000000e+00 : f32
    %59 = vector.broadcast %cst_40 : f32 to vector<8x128xf32>
    %60 = arith.addf %59, %58 : vector<8x128xf32>
    %61 = arith.divf %59, %60 : vector<8x128xf32>
    %62 = vector.extract_strided_slice %48 {offsets = [0, 128], sizes = [8, 128], strides = [1, 1]} : vector<8x384xf32> to vector<8x128xf32>
    %63 = vector.extract_strided_slice %53 {offsets = [0, 128], sizes = [8, 128], strides = [1, 1]} : vector<8x384xf32> to vector<8x128xf32>
    %64 = arith.addf %62, %63 : vector<8x128xf32>
    %65 = arith.negf %64 : vector<8x128xf32>
    %66 = math.exp %65 : vector<8x128xf32>
    %cst_41 = arith.constant 1.000000e+00 : f32
    %67 = vector.broadcast %cst_41 : f32 to vector<8x128xf32>
    %68 = arith.addf %67, %66 : vector<8x128xf32>
    %69 = arith.divf %67, %68 : vector<8x128xf32>
    %70 = vector.extract_strided_slice %48 {offsets = [0, 256], sizes = [8, 128], strides = [1, 1]} : vector<8x384xf32> to vector<8x128xf32>
    %71 = vector.extract_strided_slice %53 {offsets = [0, 256], sizes = [8, 128], strides = [1, 1]} : vector<8x384xf32> to vector<8x128xf32>
    %72 = arith.mulf %61, %71 : vector<8x128xf32>
    %73 = arith.addf %70, %72 : vector<8x128xf32>
    %74 = math.tanh %73 : vector<8x128xf32>
    %cst_42 = arith.constant 1.000000e+00 : f32
    %75 = vector.broadcast %cst_42 : f32 to vector<8x128xf32>
    %76 = arith.subf %75, %69 : vector<8x128xf32>
    %77 = arith.mulf %76, %74 : vector<8x128xf32>
    %78 = arith.mulf %69, %5 : vector<8x128xf32>
    %79 = arith.addf %77, %78 : vector<8x128xf32>
    %c0_43 = arith.constant 0 : index
    %c0_44 = arith.constant 0 : index
    %80 = vector.load %arg20[%c0_43, %c0_44] : memref<8x128xf32, #tpu.memory_space<vmem>>, vector<8x128xf32>
    tpu.vector_store %arg20[%c0_43, %c0_44], %79 {strides = array<i32>} : memref<8x128xf32, #tpu.memory_space<vmem>>, vector<8x128xf32>,
    %c0_45 = arith.constant 0 : index
    %c0_46 = arith.constant 0 : index
    %81 = vector.load %arg18[%c0_45, %c0_46] : memref<8x128xf32, #tpu.memory_space<vmem>>, vector<8x128xf32>
    tpu.vector_store %arg18[%c0_45, %c0_46], %79 {strides = array<i32>} : memref<8x128xf32, #tpu.memory_space<vmem>>, vector<8x128xf32>,
    %c0_47 = arith.constant 0 : index
    %c0_48 = arith.constant 0 : index
    %82 = vector.load %arg15[%c0_47, %c0_48] : memref<128x128xf32, #tpu.memory_space<vmem>>, vector<128x128xf32>
    %cst_49 = arith.constant dense<0.000000e+00> : vector<8x128xf32>
    %83 = tpu.matmul %79, %82, %cst_49 {dimension_numbers = #tpu.dot_dimension_numbers<[1], [0], [0], [1], [0, 0, 1, 1], [], []>} : vector<8x128xf32>, vector<128x128xf32>, vector<8x128xf32> -> vector<8x128xf32>
    %c0_50 = arith.constant 0 : index
    %c0_51 = arith.constant 0 : index
    %84 = vector.load %arg16[%c0_50, %c0_51] : memref<1x128xf32, #tpu.memory_space<vmem>>, vector<1x128xf32>
    %85 = vector.broadcast %84 : vector<1x128xf32> to vector<8x128xf32>
    %86 = arith.addf %83, %85 : vector<8x128xf32>
    %87 = tpu.iota {dimensions = array<i32: 1>} : vector<8x128xi32>
    %c80_i32 = arith.constant 80 : i32
    %88 = vector.broadcast %c80_i32 : i32 to vector<8x128xi32>
    %89 = arith.cmpi slt, %87, %88 : vector<8x128xi32>
    %cst_52 = arith.constant -1.000000e+30 : f32
    %90 = vector.broadcast %cst_52 : f32 to vector<8x128xf32>
    %91 = arith.select %89, %86, %90 : vector<8x128xi1>, vector<8x128xf32>
    %cst_53 = arith.constant dense<0xFF800000> : vector<8xf32>
    %92 = vector.multi_reduction <maximumf>, %91, %cst_53 [1] : vector<8x128xf32> to vector<8xf32>
    %93 = vector.shape_cast %92 : vector<8xf32> to vector<8x1xf32>
    %94 = vector.broadcast %93 : vector<8x1xf32> to vector<8x128xf32>
    %95 = arith.subf %91, %94 : vector<8x128xf32>
    %96 = math.exp %95 : vector<8x128xf32>
    %cst_54 = arith.constant dense<0.000000e+00> : vector<8xf32>
    %97 = vector.multi_reduction <add>, %96, %cst_54 [1] : vector<8x128xf32> to vector<8xf32>
    %98 = vector.shape_cast %97 : vector<8xf32> to vector<8x1xf32>
    %99 = math.log %98 : vector<8x1xf32>
    %100 = arith.addf %99, %93 : vector<8x1xf32>
    %101 = vector.broadcast %100 : vector<8x1xf32> to vector<8x128xf32>
    %102 = arith.subf %91, %101 : vector<8x128xf32>
    %c0_55 = arith.constant 0 : index
    %c0_56 = arith.constant 0 : index
    %c0_57 = arith.constant 0 : index
    %103 = vector.load %arg17[%c0_55, %c0_56, %c0_57] : memref<1x8x128xf32, #tpu.memory_space<vmem>>, vector<1x8x128xf32>
    %104 = vector.shape_cast %103 : vector<1x8x128xf32> to vector<8x128xf32>
    %105 = vector.shape_cast %102 : vector<8x128xf32> to vector<1x8x128xf32>
    tpu.vector_store %arg17[%c0_55, %c0_56, %c0_57], %105 {strides = array<i32>} : memref<1x8x128xf32, #tpu.memory_space<vmem>>, vector<1x8x128xf32>,
    return
  }
  func.func @transform_0(%arg0: i32, %arg1: i32) -> (i32, i32, i32) {
    %c0_i32 = arith.constant 0 : i32
    %c0_i32_0 = arith.constant 0 : i32
    return %arg1, %arg0, %c0_i32 : i32, i32, i32
  }
  func.func @transform_1(%arg0: i32, %arg1: i32) -> (i32, i32) {
    %c0_i32 = arith.constant 0 : i32
    %c0_i32_0 = arith.constant 0 : i32
    return %arg0, %c0_i32 : i32, i32
  }
  func.func @transform_2(%arg0: i32, %arg1: i32) -> (i32, i32) {
    %c0_i32 = arith.constant 0 : i32
    %c0_i32_0 = arith.constant 0 : i32
    %c0_i32_1 = arith.constant 0 : i32
    return %c0_i32, %c0_i32_0 : i32, i32
  }
  func.func @transform_3(%arg0: i32, %arg1: i32) -> (i32, i32) {
    %c0_i32 = arith.constant 0 : i32
    %c0_i32_0 = arith.constant 0 : i32
    %c0_i32_1 = arith.constant 0 : i32
    return %c0_i32, %c0_i32_0 : i32, i32
  }
  func.func @transform_4(%arg0: i32, %arg1: i32) -> (i32, i32) {
    %c0_i32 = arith.constant 0 : i32
    %c0_i32_0 = arith.constant 0 : i32
    %c0_i32_1 = arith.constant 0 : i32
    return %c0_i32, %c0_i32_0 : i32, i32
  }
  func.func @transform_5(%arg0: i32, %arg1: i32) -> (i32, i32) {
    %c0_i32 = arith.constant 0 : i32
    %c0_i32_0 = arith.constant 0 : i32
    %c0_i32_1 = arith.constant 0 : i32
    return %c0_i32, %c0_i32_0 : i32, i32
  }
  func.func @transform_6(%arg0: i32, %arg1: i32) -> (i32, i32) {
    %c0_i32 = arith.constant 0 : i32
    %c0_i32_0 = arith.constant 0 : i32
    %c0_i32_1 = arith.constant 0 : i32
    return %c0_i32, %c0_i32_0 : i32, i32
  }
  func.func @transform_7(%arg0: i32, %arg1: i32) -> (i32, i32) {
    %c0_i32 = arith.constant 0 : i32
    %c0_i32_0 = arith.constant 0 : i32
    %c0_i32_1 = arith.constant 0 : i32
    return %c0_i32, %c0_i32_0 : i32, i32
  }
  func.func @transform_8(%arg0: i32, %arg1: i32) -> (i32, i32) {
    %c0_i32 = arith.constant 0 : i32
    %c0_i32_0 = arith.constant 0 : i32
    %c0_i32_1 = arith.constant 0 : i32
    return %c0_i32, %c0_i32_0 : i32, i32
  }
  func.func @transform_9(%arg0: i32, %arg1: i32) -> (i32, i32) {
    %c0_i32 = arith.constant 0 : i32
    %c0_i32_0 = arith.constant 0 : i32
    %c0_i32_1 = arith.constant 0 : i32
    return %c0_i32, %c0_i32_0 : i32, i32
  }
  func.func @transform_10(%arg0: i32, %arg1: i32) -> (i32, i32) {
    %c0_i32 = arith.constant 0 : i32
    %c0_i32_0 = arith.constant 0 : i32
    %c0_i32_1 = arith.constant 0 : i32
    return %c0_i32, %c0_i32_0 : i32, i32
  }
  func.func @transform_11(%arg0: i32, %arg1: i32) -> (i32, i32) {
    %c0_i32 = arith.constant 0 : i32
    %c0_i32_0 = arith.constant 0 : i32
    %c0_i32_1 = arith.constant 0 : i32
    return %c0_i32, %c0_i32_0 : i32, i32
  }
  func.func @transform_12(%arg0: i32, %arg1: i32) -> (i32, i32) {
    %c0_i32 = arith.constant 0 : i32
    %c0_i32_0 = arith.constant 0 : i32
    %c0_i32_1 = arith.constant 0 : i32
    return %c0_i32, %c0_i32_0 : i32, i32
  }
  func.func @transform_13(%arg0: i32, %arg1: i32) -> (i32, i32) {
    %c0_i32 = arith.constant 0 : i32
    %c0_i32_0 = arith.constant 0 : i32
    %c0_i32_1 = arith.constant 0 : i32
    return %c0_i32, %c0_i32_0 : i32, i32
  }
  func.func @transform_14(%arg0: i32, %arg1: i32) -> (i32, i32) {
    %c0_i32 = arith.constant 0 : i32
    %c0_i32_0 = arith.constant 0 : i32
    %c0_i32_1 = arith.constant 0 : i32
    return %c0_i32, %c0_i32_0 : i32, i32
  }
  func.func @transform_15(%arg0: i32, %arg1: i32) -> (i32, i32, i32) {
    %c0_i32 = arith.constant 0 : i32
    %c0_i32_0 = arith.constant 0 : i32
    return %arg1, %arg0, %c0_i32 : i32, i32, i32
  }
  func.func @transform_16(%arg0: i32, %arg1: i32) -> (i32, i32) {
    %c0_i32 = arith.constant 0 : i32
    %c0_i32_0 = arith.constant 0 : i32
    return %arg0, %c0_i32 : i32, i32
  }
  func.func @transform_17(%arg0: i32, %arg1: i32) -> (i32, i32, i32) {
    %c0_i32 = arith.constant 0 : i32
    %c0_i32_0 = arith.constant 0 : i32
    return %arg1, %arg0, %c0_i32 : i32, i32, i32
  }
}

</mosaic_0001>

<llo_original>
// kernel: decoder_decode.1
$region0: #{decoder_decode.1}
  #allocation0 [shape = 'u32[]', space=smem, size = 0x4, offset = 0x4, fixed_abs, tag = 'smem constant byte address 0x4 - core index']
  #allocation1 [shape = 'u32[144,128]{1,0:T(1,128)}', space=vmem, size = 0x12000, scoped, tag = 'internal scratch']
  #allocation2 [shape = 'f32[8,128]{1,0:T(8,128)}', space=vmem, size = 0x1000, scoped, tag = 'scratch operand']
  %s0 = inlined_call_operand.vmem [shape: f32[6,16,128], index: 0, kind: input, shape index: {}]
  %s1 = inlined_call_operand.vmem [shape: f32[16,128], index: 1, kind: input, shape index: {}]
  %s2 = inlined_call_operand.vmem [shape: f32[128,128], index: 2, kind: input, shape index: {}]
  %s3 = inlined_call_operand.vmem [shape: f32[128,128], index: 3, kind: input, shape index: {}]
  %s4 = inlined_call_operand.vmem [shape: f32[128,128], index: 4, kind: input, shape index: {}]
  %s5 = inlined_call_operand.vmem [shape: f32[1,128], index: 5, kind: input, shape index: {}]
  %s6 = inlined_call_operand.vmem [shape: f32[128,128], index: 6, kind: input, shape index: {}]
  %s7 = inlined_call_operand.vmem [shape: f32[128,128], index: 7, kind: input, shape index: {}]
  %s8 = inlined_call_operand.vmem [shape: f32[1,128], index: 8, kind: input, shape index: {}]
  %s9 = inlined_call_operand.vmem [shape: f32[128,384], index: 9, kind: input, shape index: {}]
  %s10 = inlined_call_operand.vmem [shape: f32[1,384], index: 10, kind: input, shape index: {}]
  %s11 = inlined_call_operand.vmem [shape: f32[128,384], index: 11, kind: input, shape index: {}]
  %s12 = inlined_call_operand.vmem [shape: f32[1,384], index: 12, kind: input, shape index: {}]
  %s13 = inlined_call_operand.vmem [shape: f32[128,128], index: 13, kind: input, shape index: {}]
  %s14 = inlined_call_operand.vmem [shape: f32[1,128], index: 14, kind: input, shape index: {}]
  %s15 = inlined_call_operand.hbm [shape: f32[6,16,128], index: 15, kind: output, shape index: {0}]
  %s16 = inlined_call_operand.vmem [shape: f32[16,128], index: 16, kind: output, shape index: {1}]
  %s17 = inlined_call_operand.hbm [shape: f32[6,16,128], index: 17, kind: output, shape index: {2}]
  %18 = xla_tuple %s15, %s16, %s17
  %s19 = sld [smem:[#allocation0]]
  $region113: #{decoder_decode.1} parent=0
    _
  %s21 = ssub.s32 1, %s19
  %s22 = scalar_select 0, %s21, %s19
  $region1: #{decoder_decode.1} parent=0
    #allocation3 [shape = 'u8[8192]{0}', space=vmem, size = 0x2000, scoped, tag = 'output window, operand 0']
    #allocation4 [shape = 's32[2]{0}', space=sflag, size = 0x8, scoped, tag = 'scoped memory for decoder_decode.1']
    #allocation5 [shape = 'u8[8192]{0}', space=vmem, size = 0x2000, scoped, tag = 'output window, operand 2']
    #allocation6 [shape = 's32[2]{0}', space=sflag, size = 0x8, scoped, tag = 'scoped memory for decoder_decode.1']
    %23 = vsyncpa [#allocation4], 0
    %s24 = scalar_lea.sflag [#allocation4], 1
    %25 = vsyncpa %s24, 0
    %26 = vsyncpa [#allocation6], 0
    %s27 = scalar_lea.sflag [#allocation6], 1
    %28 = vsyncpa %s27, 0
    loop: start=0, step=1, limit=14
    $region2: #{decoder_decode.1} parent=1 // loop_pre_header
      _
    $region3: #{decoder_decode.1} parent=1 // loop_header
      %s30 = sphi 0, %s34
      %p31 = scmp.ge.s32.totalorder %s30, 14
      %s37 = sphi 0, %s49
      %s38 = sphi 0, %s45
      %s39 = sphi 0, %s37
      %s40 = sphi 0, %s38
      %s41 = sphi 0, %s39
      %s42 = sphi 0, %s40
      %s54 = sphi 0, %s56
      %s57 = sphi 0, %s54
      %s58 = sphi 0, %s57
      %s74 = sphi 0, %s58
      %s80 = sphi 0, %s82
      %s83 = sphi 0, %s80
      %s84 = sphi 0, %s83
      %s100 = sphi 0, %s84
      %s104 = sphi 0, %s104
      %s106 = sphi 0, %s104
      %s107 = sphi 0, %s106
      %s121 = sphi 0, %s107
      %s125 = sphi 0, %s125
      %s127 = sphi 0, %s125
      %s128 = sphi 0, %s127
      %s142 = sphi 0, %s128
      %s146 = sphi 0, %s146
      %s148 = sphi 0, %s146
      %s149 = sphi 0, %s148
      %s163 = sphi 0, %s149
      %s167 = sphi 0, %s167
      %s169 = sphi 0, %s167
      %s170 = sphi 0, %s169
      %s184 = sphi 0, %s170
      %s188 = sphi 0, %s188
      %s190 = sphi 0, %s188
      %s191 = sphi 0, %s190
      %s205 = sphi 0, %s191
      %s209 = sphi 0, %s209
      %s211 = sphi 0, %s209
      %s212 = sphi 0, %s211
      %s226 = sphi 0, %s212
      %s230 = sphi 0, %s230
      %s232 = sphi 0, %s230
      %s233 = sphi 0, %s232
      %s247 = sphi 0, %s233
      %s251 = sphi 0, %s251
      %s253 = sphi 0, %s251
      %s254 = sphi 0, %s253
      %s268 = sphi 0, %s254
      %s272 = sphi 0, %s272
      %s274 = sphi 0, %s272
      %s275 = sphi 0, %s274
      %s289 = sphi 0, %s275
      %s293 = sphi 0, %s293
      %s295 = sphi 0, %s293
      %s296 = sphi 0, %s295
      %s310 = sphi 0, %s296
      %s314 = sphi 0, %s314
      %s316 = sphi 0, %s314
      %s317 = sphi 0, %s316
      %s331 = sphi 0, %s317
      %s335 = sphi 0, %s335
      %s337 = sphi 0, %s335
      %s338 = sphi 0, %s337
      %s352 = sphi 0, %s338
      %s356 = sphi 0, %s356
      %s358 = sphi 0, %s356
      %s359 = sphi 0, %s358
      %s373 = sphi 0, %s359
      %s381 = sphi 0, %s383
      %s384 = sphi 0, %s381
      %s385 = sphi 0, %s384
      %s401 = sphi 0, %s385
      %s407 = sphi 0, %s409
      %s410 = sphi 0, %s407
      %s411 = sphi 0, %s410
      %s427 = sphi 0, %s411
      %s435 = sphi 0, %s437
      %s438 = sphi 0, %s435
      %s439 = sphi 0, %s438
      %s455 = sphi 0, %s439
    $region4: #{decoder_decode.1} parent=1 // loop_header_branch
      %33 = sbr.rel (%p31) target = $region8
    $region5: #{decoder_decode.1} parent=1 // loop_body
      %s35 = ssub.s32 %s30, 1
      %s36 = ssub.s32 %s30, 2
      %s43 = sadd.s32 1, %s38
      %p44 = scmp.ge.s32.totalorder %s43, 6
      %s45 = scalar_select %p44, 0, %s43
      %s46 = sadd.s32 1, %s37
      %s47 = scalar_select %p44, %s46, %s37
      %p48 = scmp.ge.s32.totalorder %s47, 2
      %s49 = scalar_select %p48, 0, %s47
      %s50 = ssub.s32 %s38, %s45
      %s51 = ssub.s32 %s37, %s49
      %s52 = sor.u32 %s50, %s51
      %p53 = scmp.eq.s32.totalorder %s52, 0
      %s55 = sadd.s32 %s54, 1
      %s56 = scalar_select %p53, %s54, %s55
      %p59 = pneg %p53
      %p60 = scmp.eq.s32.totalorder %s30, 11
      %p61 = por %p59, %p60
      %p62 = scmp.ne.s32.totalorder %s54, %s57
      %p63 = scmp.eq.s32.totalorder %s30, 0
      %p64 = por %p62, %p63
      %p65 = scmp.ne.s32.totalorder %s54, %s57
      %p66 = scmp.eq.s32.totalorder %s35, 11
      %p67 = por %p65, %p66
      %p68 = scmp.ne.s32.totalorder %s57, %s58
      %p69 = scmp.eq.s32.totalorder %s35, 0
      %p70 = por %p68, %p69
      %p71 = scmp.ne.s32.totalorder %s57, %s58
      %p72 = scmp.eq.s32.totalorder %s36, 11
      %p73 = por %p71, %p72
      %p75 = scmp.ne.s32.totalorder %s58, %s74
      %p76 = scmp.eq.s32.totalorder %s36, 0
      %p77 = por %p75, %p76
      %s78 = ssub.s32 %s37, %s49
      %p79 = scmp.eq.s32.totalorder %s78, 0
      %s81 = sadd.s32 %s80, 1
      %s82 = scalar_select %p79, %s80, %s81
      %p85 = pneg %p79
      %p86 = scmp.eq.s32.totalorder %s30, 11
      %p87 = por %p85, %p86
      %p88 = scmp.ne.s32.totalorder %s80, %s83
      %p89 = scmp.eq.s32.totalorder %s30, 0
      %p90 = por %p88, %p89
      %p91 = scmp.ne.s32.totalorder %s80, %s83
      %p92 = scmp.eq.s32.totalorder %s35, 11
      %p93 = por %p91, %p92
      %p94 = scmp.ne.s32.totalorder %s83, %s84
      %p95 = scmp.eq.s32.totalorder %s35, 0
      %p96 = por %p94, %p95
      %p97 = scmp.ne.s32.totalorder %s83, %s84
      %p98 = scmp.eq.s32.totalorder %s36, 11
      %p99 = por %p97, %p98
      %p101 = scmp.ne.s32.totalorder %s84, %s100
      %p102 = scmp.eq.s32.totalorder %s36, 0
      %p103 = por %p101, %p102
      %s105 = sadd.s32 %s104, 1
      %p108 = scmp.eq.s32.totalorder %s30, 11
      %p109 = scmp.ne.s32.totalorder %s104, %s106
      %p110 = scmp.eq.s32.totalorder %s30, 0
      %p111 = por %p109, %p110
      %p112 = scmp.ne.s32.totalorder %s104, %s106
      %p113 = scmp.eq.s32.totalorder %s35, 11
      %p114 = por %p112, %p113
      %p115 = scmp.ne.s32.totalorder %s106, %s107
      %p116 = scmp.eq.s32.totalorder %s35, 0
      %p117 = por %p115, %p116
      %p118 = scmp.ne.s32.totalorder %s106, %s107
      %p119 = scmp.eq.s32.totalorder %s36, 11
      %p120 = por %p118, %p119
      %p122 = scmp.ne.s32.totalorder %s107, %s121
      %p123 = scmp.eq.s32.totalorder %s36, 0
      %p124 = por %p122, %p123
      %s126 = sadd.s32 %s125, 1
      %p129 = scmp.eq.s32.totalorder %s30, 11
      %p130 = scmp.ne.s32.totalorder %s125, %s127
      %p131 = scmp.eq.s32.totalorder %s30, 0
      %p132 = por %p130, %p131
      %p133 = scmp.ne.s32.totalorder %s125, %s127
      %p134 = scmp.eq.s32.totalorder %s35, 11
      %p135 = por %p133, %p134
      %p136 = scmp.ne.s32.totalorder %s127, %s128
      %p137 = scmp.eq.s32.totalorder %s35, 0
      %p138 = por %p136, %p137
      %p139 = scmp.ne.s32.totalorder %s127, %s128
      %p140 = scmp.eq.s32.totalorder %s36, 11
      %p141 = por %p139, %p140
      %p143 = scmp.ne.s32.totalorder %s128, %s142
      %p144 = scmp.eq.s32.totalorder %s36, 0
      %p145 = por %p143, %p144
      %s147 = sadd.s32 %s146, 1
      %p150 = scmp.eq.s32.totalorder %s30, 11
      %p151 = scmp.ne.s32.totalorder %s146, %s148
      %p152 = scmp.eq.s32.totalorder %s30, 0
      %p153 = por %p151, %p152
      %p154 = scmp.ne.s32.totalorder %s146, %s148
      %p155 = scmp.eq.s32.totalorder %s35, 11
      %p156 = por %p154, %p155
      %p157 = scmp.ne.s32.totalorder %s148, %s149
      %p158 = scmp.eq.s32.totalorder %s35, 0
      %p159 = por %p157, %p158
      %p160 = scmp.ne.s32.totalorder %s148, %s149
      %p161 = scmp.eq.s32.totalorder %s36, 11
      %p162 = por %p160, %p161
      %p164 = scmp.ne.s32.totalorder %s149, %s163
      %p165 = scmp.eq.s32.totalorder %s36, 0
      %p166 = por %p164, %p165
      %s168 = sadd.s32 %s167, 1
      %p171 = scmp.eq.s32.totalorder %s30, 11
      %p172 = scmp.ne.s32.totalorder %s167, %s169
      %p173 = scmp.eq.s32.totalorder %s30, 0
      %p174 = por %p172, %p173
      %p175 = scmp.ne.s32.totalorder %s167, %s169
      %p176 = scmp.eq.s32.totalorder %s35, 11
      %p177 = por %p175, %p176
      %p178 = scmp.ne.s32.totalorder %s169, %s170
      %p179 = scmp.eq.s32.totalorder %s35, 0
      %p180 = por %p178, %p179
      %p181 = scmp.ne.s32.totalorder %s169, %s170
      %p182 = scmp.eq.s32.totalorder %s36, 11
      %p183 = por %p181, %p182
      %p185 = scmp.ne.s32.totalorder %s170, %s184
      %p186 = scmp.eq.s32.totalorder %s36, 0
      %p187 = por %p185, %p186
      %s189 = sadd.s32 %s188, 1
      %p192 = scmp.eq.s32.totalorder %s30, 11
      %p193 = scmp.ne.s32.totalorder %s188, %s190
      %p194 = scmp.eq.s32.totalorder %s30, 0
      %p195 = por %p193, %p194
      %p196 = scmp.ne.s32.totalorder %s188, %s190
      %p197 = scmp.eq.s32.totalorder %s35, 11
      %p198 = por %p196, %p197
      %p199 = scmp.ne.s32.totalorder %s190, %s191
      %p200 = scmp.eq.s32.totalorder %s35, 0
      %p201 = por %p199, %p200
      %p202 = scmp.ne.s32.totalorder %s190, %s191
      %p203 = scmp.eq.s32.totalorder %s36, 11
      %p204 = por %p202, %p203
      %p206 = scmp.ne.s32.totalorder %s191, %s205
      %p207 = scmp.eq.s32.totalorder %s36, 0
      %p208 = por %p206, %p207
      %s210 = sadd.s32 %s209, 1
      %p213 = scmp.eq.s32.totalorder %s30, 11
      %p214 = scmp.ne.s32.totalorder %s209, %s211
      %p215 = scmp.eq.s32.totalorder %s30, 0
      %p216 = por %p214, %p215
      %p217 = scmp.ne.s32.totalorder %s209, %s211
      %p218 = scmp.eq.s32.totalorder %s35, 11
      %p219 = por %p217, %p218
      %p220 = scmp.ne.s32.totalorder %s211, %s212
      %p221 = scmp.eq.s32.totalorder %s35, 0
      %p222 = por %p220, %p221
      %p223 = scmp.ne.s32.totalorder %s211, %s212
      %p224 = scmp.eq.s32.totalorder %s36, 11
      %p225 = por %p223, %p224
      %p227 = scmp.ne.s32.totalorder %s212, %s226
      %p228 = scmp.eq.s32.totalorder %s36, 0
      %p229 = por %p227, %p228
      %s231 = sadd.s32 %s230, 1
      %p234 = scmp.eq.s32.totalorder %s30, 11
      %p235 = scmp.ne.s32.totalorder %s230, %s232
      %p236 = scmp.eq.s32.totalorder %s30, 0
      %p237 = por %p235, %p236
      %p238 = scmp.ne.s32.totalorder %s230, %s232
      %p239 = scmp.eq.s32.totalorder %s35, 11
      %p240 = por %p238, %p239
      %p241 = scmp.ne.s32.totalorder %s232, %s233
      %p242 = scmp.eq.s32.totalorder %s35, 0
      %p243 = por %p241, %p242
      %p244 = scmp.ne.s32.totalorder %s232, %s233
      %p245 = scmp.eq.s32.totalorder %s36, 11
      %p246 = por %p244, %p245
      %p248 = scmp.ne.s32.totalorder %s233, %s247
      %p249 = scmp.eq.s32.totalorder %s36, 0
      %p250 = por %p248, %p249
      %s252 = sadd.s32 %s251, 1
      %p255 = scmp.eq.s32.totalorder %s30, 11
      %p256 = scmp.ne.s32.totalorder %s251, %s253
      %p257 = scmp.eq.s32.totalorder %s30, 0
      %p258 = por %p256, %p257
      %p259 = scmp.ne.s32.totalorder %s251, %s253
      %p260 = scmp.eq.s32.totalorder %s35, 11
      %p261 = por %p259, %p260
      %p262 = scmp.ne.s32.totalorder %s253, %s254
      %p263 = scmp.eq.s32.totalorder %s35, 0
      %p264 = por %p262, %p263
      %p265 = scmp.ne.s32.totalorder %s253, %s254
      %p266 = scmp.eq.s32.totalorder %s36, 11
      %p267 = por %p265, %p266
      %p269 = scmp.ne.s32.totalorder %s254, %s268
      %p270 = scmp.eq.s32.totalorder %s36, 0
      %p271 = por %p269, %p270
      %s273 = sadd.s32 %s272, 1
      %p276 = scmp.eq.s32.totalorder %s30, 11
      %p277 = scmp.ne.s32.totalorder %s272, %s274
      %p278 = scmp.eq.s32.totalorder %s30, 0
      %p279 = por %p277, %p278
      %p280 = scmp.ne.s32.totalorder %s272, %s274
      %p281 = scmp.eq.s32.totalorder %s35, 11
      %p282 = por %p280, %p281
      %p283 = scmp.ne.s32.totalorder %s274, %s275
      %p284 = scmp.eq.s32.totalorder %s35, 0
      %p285 = por %p283, %p284
      %p286 = scmp.ne.s32.totalorder %s274, %s275
      %p287 = scmp.eq.s32.totalorder %s36, 11
      %p288 = por %p286, %p287
      %p290 = scmp.ne.s32.totalorder %s275, %s289
      %p291 = scmp.eq.s32.totalorder %s36, 0
      %p292 = por %p290, %p291
      %s294 = sadd.s32 %s293, 1
      %p297 = scmp.eq.s32.totalorder %s30, 11
      %p298 = scmp.ne.s32.totalorder %s293, %s295
      %p299 = scmp.eq.s32.totalorder %s30, 0
      %p300 = por %p298, %p299
      %p301 = scmp.ne.s32.totalorder %s293, %s295
      %p302 = scmp.eq.s32.totalorder %s35, 11
      %p303 = por %p301, %p302
      %p304 = scmp.ne.s32.totalorder %s295, %s296
      %p305 = scmp.eq.s32.totalorder %s35, 0
      %p306 = por %p304, %p305
      %p307 = scmp.ne.s32.totalorder %s295, %s296
      %p308 = scmp.eq.s32.totalorder %s36, 11
      %p309 = por %p307, %p308
      %p311 = scmp.ne.s32.totalorder %s296, %s310
      %p312 = scmp.eq.s32.totalorder %s36, 0
      %p313 = por %p311, %p312
      %s315 = sadd.s32 %s314, 1
      %p318 = scmp.eq.s32.totalorder %s30, 11
      %p319 = scmp.ne.s32.totalorder %s314, %s316
      %p320 = scmp.eq.s32.totalorder %s30, 0
      %p321 = por %p319, %p320
      %p322 = scmp.ne.s32.totalorder %s314, %s316
      %p323 = scmp.eq.s32.totalorder %s35, 11
      %p324 = por %p322, %p323
      %p325 = scmp.ne.s32.totalorder %s316, %s317
      %p326 = scmp.eq.s32.totalorder %s35, 0
      %p327 = por %p325, %p326
      %p328 = scmp.ne.s32.totalorder %s316, %s317
      %p329 = scmp.eq.s32.totalorder %s36, 11
      %p330 = por %p328, %p329
      %p332 = scmp.ne.s32.totalorder %s317, %s331
      %p333 = scmp.eq.s32.totalorder %s36, 0
      %p334 = por %p332, %p333
      %s336 = sadd.s32 %s335, 1
      %p339 = scmp.eq.s32.totalorder %s30, 11
      %p340 = scmp.ne.s32.totalorder %s335, %s337
      %p341 = scmp.eq.s32.totalorder %s30, 0
      %p342 = por %p340, %p341
      %p343 = scmp.ne.s32.totalorder %s335, %s337
      %p344 = scmp.eq.s32.totalorder %s35, 11
      %p345 = por %p343, %p344
      %p346 = scmp.ne.s32.totalorder %s337, %s338
      %p347 = scmp.eq.s32.totalorder %s35, 0
      %p348 = por %p346, %p347
      %p349 = scmp.ne.s32.totalorder %s337, %s338
      %p350 = scmp.eq.s32.totalorder %s36, 11
      %p351 = por %p349, %p350
      %p353 = scmp.ne.s32.totalorder %s338, %s352
      %p354 = scmp.eq.s32.totalorder %s36, 0
      %p355 = por %p353, %p354
      %s357 = sadd.s32 %s356, 1
      %p360 = scmp.eq.s32.totalorder %s30, 11
      %p361 = scmp.ne.s32.totalorder %s356, %s358
      %p362 = scmp.eq.s32.totalorder %s30, 0
      %p363 = por %p361, %p362
      %p364 = scmp.ne.s32.totalorder %s356, %s358
      %p365 = scmp.eq.s32.totalorder %s35, 11
      %p366 = por %p364, %p365
      %p367 = scmp.ne.s32.totalorder %s358, %s359
      %p368 = scmp.eq.s32.totalorder %s35, 0
      %p369 = por %p367, %p368
      %p370 = scmp.ne.s32.totalorder %s358, %s359
      %p371 = scmp.eq.s32.totalorder %s36, 11
      %p372 = por %p370, %p371
      %p374 = scmp.ne.s32.totalorder %s359, %s373
      %p375 = scmp.eq.s32.totalorder %s36, 0
      %p376 = por %p374, %p375
      %s377 = ssub.s32 %s38, %s45
      %s378 = ssub.s32 %s37, %s49
      %s379 = sor.u32 %s377, %s378
      %p380 = scmp.eq.s32.totalorder %s379, 0
      %s382 = sadd.s32 %s381, 1
      %s383 = scalar_select %p380, %s381, %s382
      %p386 = pneg %p380
      %p387 = scmp.eq.s32.totalorder %s30, 11
      %p388 = por %p386, %p387
      %p389 = scmp.ne.s32.totalorder %s381, %s384
      %p390 = scmp.eq.s32.totalorder %s30, 0
      %p391 = por %p389, %p390
      %p392 = scmp.ne.s32.totalorder %s381, %s384
      %p393 = scmp.eq.s32.totalorder %s35, 11
      %p394 = por %p392, %p393
      %p395 = scmp.ne.s32.totalorder %s384, %s385
      %p396 = scmp.eq.s32.totalorder %s35, 0
      %p397 = por %p395, %p396
      %p398 = scmp.ne.s32.totalorder %s384, %s385
      %p399 = scmp.eq.s32.totalorder %s36, 11
      %p400 = por %p398, %p399
      %p402 = scmp.ne.s32.totalorder %s385, %s401
      %p403 = scmp.eq.s32.totalorder %s36, 0
      %p404 = por %p402, %p403
      %s405 = ssub.s32 %s37, %s49
      %p406 = scmp.eq.s32.totalorder %s405, 0
      %s408 = sadd.s32 %s407, 1
      %s409 = scalar_select %p406, %s407, %s408
      %p412 = pneg %p406
      %p413 = scmp.eq.s32.totalorder %s30, 11
      %p414 = por %p412, %p413
      %p415 = scmp.ne.s32.totalorder %s407, %s410
      %p416 = scmp.eq.s32.totalorder %s30, 0
      %p417 = por %p415, %p416
      %p418 = scmp.ne.s32.totalorder %s407, %s410
      %p419 = scmp.eq.s32.totalorder %s35, 11
      %p420 = por %p418, %p419
      %p421 = scmp.ne.s32.totalorder %s410, %s411
      %p422 = scmp.eq.s32.totalorder %s35, 0
      %p423 = por %p421, %p422
      %p424 = scmp.ne.s32.totalorder %s410, %s411
      %p425 = scmp.eq.s32.totalorder %s36, 11
      %p426 = por %p424, %p425
      %p428 = scmp.ne.s32.totalorder %s411, %s427
      %p429 = scmp.eq.s32.totalorder %s36, 0
      %p430 = por %p428, %p429
      %s431 = ssub.s32 %s38, %s45
      %s432 = ssub.s32 %s37, %s49
      %s433 = sor.u32 %s431, %s432
      %p434 = scmp.eq.s32.totalorder %s433, 0
      %s436 = sadd.s32 %s435, 1
      %s437 = scalar_select %p434, %s435, %s436
      %p440 = pneg %p434
      %p441 = scmp.eq.s32.totalorder %s30, 11
      %p442 = por %p440, %p441
      %p443 = scmp.ne.s32.totalorder %s435, %s438
      %p444 = scmp.eq.s32.totalorder %s30, 0
      %p445 = por %p443, %p444
      %p446 = scmp.ne.s32.totalorder %s435, %s438
      %p447 = scmp.eq.s32.totalorder %s35, 11
      %p448 = por %p446, %p447
      %p449 = scmp.ne.s32.totalorder %s438, %s439
      %p450 = scmp.eq.s32.totalorder %s35, 0
      %p451 = por %p449, %p450
      %p452 = scmp.ne.s32.totalorder %s438, %s439
      %p453 = scmp.eq.s32.totalorder %s36, 11
      %p454 = por %p452, %p453
      %p456 = scmp.ne.s32.totalorder %s439, %s455
      %p457 = scmp.eq.s32.totalorder %s36, 0
      %p458 = por %p456, %p457
      %p459 = scmp.le.s32.totalorder 1, %s30
      %p460 = scmp.lt.s32.totalorder %s30, 13
      %p461 = pnand %p459, %p460
      %p462 = pneg %p461
      // Predicated region
      $region9: #{decoder_decode.1} parent=5 // pred_check
        _
      $region10: #{decoder_decode.1} parent=5 // pred_check_branch
        %464 = sbr.rel (%p461) target = $region12
      $region11: #{decoder_decode.1} parent=5 // pred_region
        %s465 = ssub.s32 %s30, 1
        // Predicated region
        $region13: #{decoder_decode.1} parent=11 // pred_check
          %p466 = pneg %p117
        $region14: #{decoder_decode.1} parent=11 // pred_check_branch
          %468 = sbr.rel (%p466) target = $region16
        $region15: #{decoder_decode.1} parent=11 // pred_region
          _
        $region16: #{decoder_decode.1} parent=11 // pred_fallthru
          _
        // Predicated region
        $region17: #{decoder_decode.1} parent=11 // pred_check
          %p469 = pneg %p138
        $region18: #{decoder_decode.1} parent=11 // pred_check_branch
          %471 = sbr.rel (%p469) target = $region20
        $region19: #{decoder_decode.1} parent=11 // pred_region
          _
        $region20: #{decoder_decode.1} parent=11 // pred_fallthru
          _
        // Predicated region
        $region21: #{decoder_decode.1} parent=11 // pred_check
          %p472 = pneg %p159
        $region22: #{decoder_decode.1} parent=11 // pred_check_branch
          %474 = sbr.rel (%p472) target = $region24
        $region23: #{decoder_decode.1} parent=11 // pred_region
          _
        $region24: #{decoder_decode.1} parent=11 // pred_fallthru
          _
        // Predicated region
        $region25: #{decoder_decode.1} parent=11 // pred_check
          %p475 = pneg %p180
        $region26: #{decoder_decode.1} parent=11 // pred_check_branch
          %477 = sbr.rel (%p475) target = $region28
        $region27: #{decoder_decode.1} parent=11 // pred_region
          _
        $region28: #{decoder_decode.1} parent=11 // pred_fallthru
          _
        // Predicated region
        $region29: #{decoder_decode.1} parent=11 // pred_check
          %p478 = pneg %p201
        $region30: #{decoder_decode.1} parent=11 // pred_check_branch
          %480 = sbr.rel (%p478) target = $region32
        $region31: #{decoder_decode.1} parent=11 // pred_region
          _
        $region32: #{decoder_decode.1} parent=11 // pred_fallthru
          _
        // Predicated region
        $region33: #{decoder_decode.1} parent=11 // pred_check
          %p481 = pneg %p222
        $region34: #{decoder_decode.1} parent=11 // pred_check_branch
          %483 = sbr.rel (%p481) target = $region36
        $region35: #{decoder_decode.1} parent=11 // pred_region
          _
        $region36: #{decoder_decode.1} parent=11 // pred_fallthru
          _
        // Predicated region
        $region37: #{decoder_decode.1} parent=11 // pred_check
          %p484 = pneg %p243
        $region38: #{decoder_decode.1} parent=11 // pred_check_branch
          %486 = sbr.rel (%p484) target = $region40
        $region39: #{decoder_decode.1} parent=11 // pred_region
          _
        $region40: #{decoder_decode.1} parent=11 // pred_fallthru
          _
        // Predicated region
        $region41: #{decoder_decode.1} parent=11 // pred_check
          %p487 = pneg %p264
        $region42: #{decoder_decode.1} parent=11 // pred_check_branch
          %489 = sbr.rel (%p487) target = $region44
        $region43: #{decoder_decode.1} parent=11 // pred_region
          _
        $region44: #{decoder_decode.1} parent=11 // pred_fallthru
          _
        // Predicated region
        $region45: #{decoder_decode.1} parent=11 // pred_check
          %p490 = pneg %p285
        $region46: #{decoder_decode.1} parent=11 // pred_check_branch
          %492 = sbr.rel (%p490) target = $region48
        $region47: #{decoder_decode.1} parent=11 // pred_region
          _
        $region48: #{decoder_decode.1} parent=11 // pred_fallthru
          _
        // Predicated region
        $region49: #{decoder_decode.1} parent=11 // pred_check
          %p493 = pneg %p306
        $region50: #{decoder_decode.1} parent=11 // pred_check_branch
          %495 = sbr.rel (%p493) target = $region52
        $region51: #{decoder_decode.1} parent=11 // pred_region
          _
        $region52: #{decoder_decode.1} parent=11 // pred_fallthru
          _
        // Predicated region
        $region53: #{decoder_decode.1} parent=11 // pred_check
          %p496 = pneg %p327
        $region54: #{decoder_decode.1} parent=11 // pred_check_branch
          %498 = sbr.rel (%p496) target = $region56
        $region55: #{decoder_decode.1} parent=11 // pred_region
          _
        $region56: #{decoder_decode.1} parent=11 // pred_fallthru
          _
        // Predicated region
        $region57: #{decoder_decode.1} parent=11 // pred_check
          %p499 = pneg %p348
        $region58: #{decoder_decode.1} parent=11 // pred_check_branch
          %501 = sbr.rel (%p499) target = $region60
        $region59: #{decoder_decode.1} parent=11 // pred_region
          _
        $region60: #{decoder_decode.1} parent=11 // pred_fallthru
          _
        // Predicated region
        $region61: #{decoder_decode.1} parent=11 // pred_check
          %p502 = pneg %p369
        $region62: #{decoder_decode.1} parent=11 // pred_check_branch
          %504 = sbr.rel (%p502) target = $region64
        $region63: #{decoder_decode.1} parent=11 // pred_region
          _
        $region64: #{decoder_decode.1} parent=11 // pred_fallthru
          _
      $region12: #{decoder_decode.1} parent=5 // pred_fallthru
        _
      %p505 = scmp.lt.s32.totalorder %s30, 12
      // Predicated region
      $region65: #{decoder_decode.1} parent=5 // pred_check
        %p506 = pneg %p505
      $region66: #{decoder_decode.1} parent=5 // pred_check_branch
        %508 = sbr.rel (%p506) target = $region68
      $region67: #{decoder_decode.1} parent=5 // pred_region
        // Predicated region
        $region69: #{decoder_decode.1} parent=67 // pred_check
          %p509 = pneg %p64
        $region70: #{decoder_decode.1} parent=67 // pred_check_branch
          %511 = sbr.rel (%p509) target = $region72
        $region71: #{decoder_decode.1} parent=67 // pred_region
          %p512 = scmp.lt.s32.totalorder %s38, 5
          %s513 = scalar_select %p512, %s38, 5
          %p514 = scmp.lt.s32.totalorder %s37, 1
          %s515 = scalar_select %p514, %s37, 1
          %s516 = smul.addr %s513, 2
          %s517 = sadd.s32 %s515, %s516
          %s518 = smul.addr %s517, 8
          %s519 = scalar_lea.vmem %s0, %s518
        $region72: #{decoder_decode.1} parent=67 // pred_fallthru
          _
        // Predicated region
        $region73: #{decoder_decode.1} parent=67 // pred_check
          %p520 = pneg %p90
        $region74: #{decoder_decode.1} parent=67 // pred_check_branch
          %522 = sbr.rel (%p520) target = $region76
        $region75: #{decoder_decode.1} parent=67 // pred_region
          %p523 = scmp.lt.s32.totalorder %s37, 1
          %s524 = scalar_select %p523, %s37, 1
          %s525 = smul.addr %s524, 8
          %s526 = scalar_lea.vmem %s1, %s525
        $region76: #{decoder_decode.1} parent=67 // pred_fallthru
          _
      $region68: #{decoder_decode.1} parent=5 // pred_fallthru
        _
      %p527 = scmp.le.s32.totalorder 1, %s30
      %p528 = scmp.lt.s32.totalorder %s30, 13
      %p529 = pnand %p527, %p528
      %p530 = pneg %p529
      // Predicated region
      $region77: #{decoder_decode.1} parent=5 // pred_check
        _
      $region78: #{decoder_decode.1} parent=5 // pred_check_branch
        %532 = sbr.rel (%p529) target = $region80
      $region79: #{decoder_decode.1} parent=5 // pred_region
        %s533 = ssub.s32 %s30, 1
        %p534 = scmp.lt.s32.totalorder %s40, 5
        %s535 = scalar_select %p534, %s40, 5
        %p536 = scmp.lt.s32.totalorder %s39, 1
        %s537 = scalar_select %p536, %s39, 1
        %s538 = smul.addr %s535, 2
        %s539 = sadd.s32 %s537, %s538
        %s540 = smul.addr %s539, 8
        %s541 = scalar_lea.vmem %s0, %s540
        %p542 = pneg %p70
        %p543 = pneg %p67
        %p544 = scmp.lt.s32.totalorder %s39, 1
        %s545 = scalar_select %p544, %s39, 1
        %s546 = smul.addr %s545, 8
        %s547 = scalar_lea.vmem %s1, %s546
        %p548 = pneg %p96
        %p549 = pneg %p93
        %p550 = pneg %p117
        %p551 = pneg %p114
        %p552 = pneg %p138
        %p553 = pneg %p135
        %p554 = pneg %p159
        %p555 = pneg %p156
        %p556 = pneg %p180
        %p557 = pneg %p177
        %p558 = pneg %p201
        %p559 = pneg %p198
        %p560 = pneg %p222
        %p561 = pneg %p219
        %p562 = pneg %p243
        %p563 = pneg %p240
        %p564 = pneg %p264
        %p565 = pneg %p261
        %p566 = pneg %p285
        %p567 = pneg %p282
        %p568 = pneg %p306
        %p569 = pneg %p303
        %p570 = pneg %p327
        %p571 = pneg %p324
        %p572 = pneg %p348
        %p573 = pneg %p345
        %p574 = pneg %p369
        %p575 = pneg %p366
        %p576 = pneg %p397
        %p577 = pneg %p394
        %s578 = sand.u32 %s384, 1
        %s579 = scalar_lea.sflag [#allocation4], %s578
        %s580 = sand.u32 %s384, 1
        %s581 = smul.addr %s580, 8
        %s582 = scalar_lea.vmem [#allocation3], %s581
        %p583 = pneg %p423
        %p584 = pneg %p420
        %p585 = scmp.lt.s32.totalorder %s39, 1
        %s586 = scalar_select %p585, %s39, 1
        %s587 = smul.addr %s586, 8
        %s588 = scalar_lea.vmem %s16, %s587
        %p589 = pneg %p451
        %p590 = pneg %p448
        %s591 = sand.u32 %s438, 1
        %s592 = scalar_lea.sflag [#allocation6], %s591
        %s593 = sand.u32 %s438, 1
        %s594 = smul.addr %s593, 8
        %s595 = scalar_lea.vmem [#allocation5], %s594
        %p596 = scmp.lt.s32.totalorder %s40, 5
        %s597 = scalar_select %p596, %s40, 5
        %p598 = scmp.lt.s32.totalorder %s39, 1
        %s599 = scalar_select %p598, %s39, 1
        %s600 = smul.addr %s597, 2
        %s601 = sadd.s32 %s599, %s600
        %s602 = smul.addr %s601, 8
        %s603 = scalar_lea.vmem %s0, %s602
        %p604 = scmp.lt.s32.totalorder %s39, 1
        %s605 = scalar_select %p604, %s39, 1
        %s606 = smul.addr %s605, 8
        %s607 = scalar_lea.vmem %s1, %s606
        %p608 = scmp.lt.s32.totalorder %s39, 1
        %s609 = scalar_select %p608, %s39, 1
        %s610 = smul.addr %s609, 8
        %s611 = scalar_lea.vmem %s16, %s610
        %p612 = scmp.eq.s32.totalorder %s40, 0
        // Predicated region
        $region81: #{decoder_decode.1} parent=79 // pred_check
          %p613 = pneg %p612
        $region82: #{decoder_decode.1} parent=79 // pred_check_branch
          %615 = sbr.rel (%p613) target = $region84
        $region83: #{decoder_decode.1} parent=79 // pred_region
          %v616 = vld [vmem:[%s607] sm:$0xff]
          %617 = vst [vmem:[#allocation2] sm:$0xff] %v616
        $region84: #{decoder_decode.1} parent=79 // pred_fallthru
          _
        %v618 = vld [vmem:[%s603] sm:$0xff]
        %v619 = vld [vmem:[#allocation2] sm:$0xff]
        %v620 = vld [vmem:[%s3] sm:$0xff]
        %v621 = vld [vmem:[%s3 + $0x8] sm:$0xff]
        %v622 = vld [vmem:[%s3 + $0x10] sm:$0xff]
        %v623 = vld [vmem:[%s3 + $0x18] sm:$0xff]
        %v624 = vld [vmem:[%s3 + $0x20] sm:$0xff]
        %v625 = vld [vmem:[%s3 + $0x28] sm:$0xff]
        %v626 = vld [vmem:[%s3 + $0x30] sm:$0xff]
        %v627 = vld [vmem:[%s3 + $0x38] sm:$0xff]
        %v628 = vld [vmem:[%s3 + $0x40] sm:$0xff]
        %v629 = vld [vmem:[%s3 + $0x48] sm:$0xff]
        %v630 = vld [vmem:[%s3 + $0x50] sm:$0xff]
        %v631 = vld [vmem:[%s3 + $0x58] sm:$0xff]
        %v632 = vld [vmem:[%s3 + $0x60] sm:$0xff]
        %v633 = vld [vmem:[%s3 + $0x68] sm:$0xff]
        %v634 = vld [vmem:[%s3 + $0x70] sm:$0xff]
        %v635 = vld [vmem:[%s3 + $0x78] sm:$0xff]
        %v636 = vld [vmem:[%s4] sm:$0xff]
        %v637 = vld [vmem:[%s4 + $0x8] sm:$0xff]
        %v638 = vld [vmem:[%s4 + $0x10] sm:$0xff]
        %v639 = vld [vmem:[%s4 + $0x18] sm:$0xff]
        %v640 = vld [vmem:[%s4 + $0x20] sm:$0xff]
        %v641 = vld [vmem:[%s4 + $0x28] sm:$0xff]
        %v642 = vld [vmem:[%s4 + $0x30] sm:$0xff]
        %v643 = vld [vmem:[%s4 + $0x38] sm:$0xff]
        %v644 = vld [vmem:[%s4 + $0x40] sm:$0xff]
        %v645 = vld [vmem:[%s4 + $0x48] sm:$0xff]
        %v646 = vld [vmem:[%s4 + $0x50] sm:$0xff]
        %v647 = vld [vmem:[%s4 + $0x58] sm:$0xff]
        %v648 = vld [vmem:[%s4 + $0x60] sm:$0xff]
        %v649 = vld [vmem:[%s4 + $0x68] sm:$0xff]
        %v650 = vld [vmem:[%s4 + $0x70] sm:$0xff]
        %v651 = vld [vmem:[%s4 + $0x78] sm:$0xff]
        %652 = vmatprep.subr.mxu0 0.0
        %653 = vmatpush1.msra.mxu0 %v636
        %654 = vmatprep.subr.mxu0 0.0
        %655 = vmatpush1.msra.mxu0 %v637
        %656 = vmatprep.subr.mxu0 0.0
        %657 = vmatpush1.msra.mxu0 %v638
        %658 = vmatprep.subr.mxu0 0.0
        %659 = vmatpush1.msra.mxu0 %v639
        %660 = vmatprep.subr.mxu0 0.0
        %661 = vmatpush1.msra.mxu0 %v640
        %662 = vmatprep.subr.mxu0 0.0
        %663 = vmatpush1.msra.mxu0 %v641
        %664 = vmatprep.subr.mxu0 0.0
        %665 = vmatpush1.msra.mxu0 %v642
        %666 = vmatprep.subr.mxu0 0.0
        %667 = vmatpush1.msra.mxu0 %v643
        %668 = vmatprep.subr.mxu0 0.0
        %669 = vmatpush1.msra.mxu0 %v644
        %670 = vmatprep.subr.mxu0 0.0
        %671 = vmatpush1.msra.mxu0 %v645
        %672 = vmatprep.subr.mxu0 0.0
        %673 = vmatpush1.msra.mxu0 %v646
        %674 = vmatprep.subr.mxu0 0.0
        %675 = vmatpush1.msra.mxu0 %v647
        %676 = vmatprep.subr.mxu0 0.0
        %677 = vmatpush1.msra.mxu0 %v648
        %678 = vmatprep.subr.mxu0 0.0
        %679 = vmatpush1.msra.mxu0 %v649
        %680 = vmatprep.subr.mxu0 0.0
        %681 = vmatpush1.msra.mxu0 %v650
        %682 = vmatprep.subr.mxu0 0.0
        %683 = vmatpush1.msra.mxu0 %v651
        %684 = vmatprep.subr.mxu0 0.0
        %685 = vmatpush1.msra.mxu0 0.0
        %686 = vmatprep.subr.mxu0 0.0
        %687 = vmatpush1.msra.mxu0 0.0
        %688 = vmatprep.subr.mxu0 0.0
        %689 = vmatpush1.msra.mxu0 0.0
        %690 = vmatprep.subr.mxu0 0.0
        %691 = vmatpush1.msra.mxu0 0.0
        %692 = vmatprep.subr.mxu0 0.0
        %693 = vmatpush1.msra.mxu0 0.0
        %694 = vmatprep.subr.mxu0 0.0
        %695 = vmatpush1.msra.mxu0 0.0
        %696 = vmatprep.subr.mxu0 0.0
        %697 = vmatpush1.msra.mxu0 0.0
        %698 = vmatprep.subr.mxu0 0.0
        %699 = vmatpush1.msra.mxu0 0.0
        %700 = vmatprep.subr.mxu0 0.0
        %701 = vmatpush1.msra.mxu0 0.0
        %702 = vmatprep.subr.mxu0 0.0
        %703 = vmatpush1.msra.mxu0 0.0
        %704 = vmatprep.subr.mxu0 0.0
        %705 = vmatpush1.msra.mxu0 0.0
        %706 = vmatprep.subr.mxu0 0.0
        %707 = vmatpush1.msra.mxu0 0.0
        %708 = vmatprep.subr.mxu0 0.0
        %709 = vmatpush1.msra.mxu0 0.0
        %710 = vmatprep.subr.mxu0 0.0
        %711 = vmatpush1.msra.mxu0 0.0
        %712 = vmatprep.subr.mxu0 0.0
        %713 = vmatpush1.msra.mxu0 0.0
        %714 = vmatprep.subr.mxu0 0.0
        %715 = vmatpush1.msra.mxu0 0.0
        %716 = vmatprep.mubr.f32.mxu0 0.0
        %717 = vmatmul.mubr.f32.gmra.mrb[0].mxu0 %v619
        %v718 = vpop.f32.mrb[0].mxu0
        %v719 = vadd.f32 0.0, %v718
        %v720 = vpop.f32.mrb[0].mxu0
        %721 = vdwg.mxu0
        %722 = vmatprep.subr.mxu0 0.0
        %723 = vmatpush1.msra.mxu0 %v620
        %724 = vmatprep.subr.mxu0 0.0
        %725 = vmatpush1.msra.mxu0 %v621
        %726 = vmatprep.subr.mxu0 0.0
        %727 = vmatpush1.msra.mxu0 %v622
        %728 = vmatprep.subr.mxu0 0.0
        %729 = vmatpush1.msra.mxu0 %v623
        %730 = vmatprep.subr.mxu0 0.0
        %731 = vmatpush1.msra.mxu0 %v624
        %732 = vmatprep.subr.mxu0 0.0
        %733 = vmatpush1.msra.mxu0 %v625
        %734 = vmatprep.subr.mxu0 0.0
        %735 = vmatpush1.msra.mxu0 %v626
        %736 = vmatprep.subr.mxu0 0.0
        %737 = vmatpush1.msra.mxu0 %v627
        %738 = vmatprep.subr.mxu0 0.0
        %739 = vmatpush1.msra.mxu0 %v628
        %740 = vmatprep.subr.mxu0 0.0
        %741 = vmatpush1.msra.mxu0 %v629
        %742 = vmatprep.subr.mxu0 0.0
        %743 = vmatpush1.msra.mxu0 %v630
        %744 = vmatprep.subr.mxu0 0.0
        %745 = vmatpush1.msra.mxu0 %v631
        %746 = vmatprep.subr.mxu0 0.0
        %747 = vmatpush1.msra.mxu0 %v632
        %748 = vmatprep.subr.mxu0 0.0
        %749 = vmatpush1.msra.mxu0 %v633
        %750 = vmatprep.subr.mxu0 0.0
        %751 = vmatpush1.msra.mxu0 %v634
        %752 = vmatprep.subr.mxu0 0.0
        %753 = vmatpush1.msra.mxu0 %v635
        %754 = vmatprep.subr.mxu0 0.0
        %755 = vmatpush1.msra.mxu0 0.0
        %756 = vmatprep.subr.mxu0 0.0
        %757 = vmatpush1.msra.mxu0 0.0
        %758 = vmatprep.subr.mxu0 0.0
        %759 = vmatpush1.msra.mxu0 0.0
        %760 = vmatprep.subr.mxu0 0.0
        %761 = vmatpush1.msra.mxu0 0.0
        %762 = vmatprep.subr.mxu0 0.0
        %763 = vmatpush1.msra.mxu0 0.0
        %764 = vmatprep.subr.mxu0 0.0
        %765 = vmatpush1.msra.mxu0 0.0
        %766 = vmatprep.subr.mxu0 0.0
        %767 = vmatpush1.msra.mxu0 0.0
        %768 = vmatprep.subr.mxu0 0.0
        %769 = vmatpush1.msra.mxu0 0.0
        %770 = vmatprep.subr.mxu0 0.0
        %771 = vmatpush1.msra.mxu0 0.0
        %772 = vmatprep.subr.mxu0 0.0
        %773 = vmatpush1.msra.mxu0 0.0
        %774 = vmatprep.subr.mxu0 0.0
        %775 = vmatpush1.msra.mxu0 0.0
        %776 = vmatprep.subr.mxu0 0.0
        %777 = vmatpush1.msra.mxu0 0.0
        %778 = vmatprep.subr.mxu0 0.0
        %779 = vmatpush1.msra.mxu0 0.0
        %780 = vmatprep.subr.mxu0 0.0
        %781 = vmatpush1.msra.mxu0 0.0
        %782 = vmatprep.subr.mxu0 0.0
        %783 = vmatpush1.msra.mxu0 0.0
        %784 = vmatprep.subr.mxu0 0.0
        %785 = vmatpush1.msra.mxu0 0.0
        %786 = vmatprep.mubr.f32.mxu0 0.0
        %787 = vmatmul.mubr.f32.gmra.mrb[0].mxu0 %v618
        %v788 = vpop.f32.mrb[0].mxu0
        %v789 = vadd.f32 %v719, %v788
        %v790 = vpop.f32.mrb[0].mxu0
        %791 = vdwg.mxu0
        %v792 = vld [vmem:[%s5] sm:$0x1]
        %v794 = vlaneseq
        %v795 = vshrl.u32 %v794, 7
        %v796 = vsub.s32 0, %v795
        %v797 = vrot.slane %v792, %v796
        %v799 = vadd.f32 %v789, %v797
        %v800 = vlaneseq
        %v801 = vand.u32 %v800, 127
        %vm802 = vcmp.lt.s32.totalorder %v801, 20
        %v803 = vsel %vm802, %v799, -1e+30
        %804 = vmax.xlane.f32.xlu0 %v803
        %v805 = vpop.xlane.xlu0 %804
        %v806 = vsub.f32 %v803, %v805
        %v807 = vmul.f32 %v806, 1.442695
        %v808 = vpow.pop %v807
        %809 = vadd.xlane.f32.xlu0 %v808
        %v810 = vpop.xlane.xlu0 %809
        %v811 = vrcp.pop %v810
        %v812 = vmul.f32 %v808, %v811
        %813 = vst [vmem:[%s595] sm:$0xff] %v812
        %v814 = vld [vmem:[%s2] sm:$0xff]
        %v815 = vld [vmem:[%s2 + $0x8] sm:$0xff]
        %v816 = vld [vmem:[%s2 + $0x10] sm:$0xff]
        %v817 = vld [vmem:[%s2 + $0x18] sm:$0xff]
        %v818 = vld [vmem:[%s2 + $0x20] sm:$0xff]
        %v819 = vld [vmem:[%s2 + $0x28] sm:$0xff]
        %v820 = vld [vmem:[%s2 + $0x30] sm:$0xff]
        %v821 = vld [vmem:[%s2 + $0x38] sm:$0xff]
        %v822 = vld [vmem:[%s2 + $0x40] sm:$0xff]
        %v823 = vld [vmem:[%s2 + $0x48] sm:$0xff]
        %v824 = vld [vmem:[%s2 + $0x50] sm:$0xff]
        %v825 = vld [vmem:[%s2 + $0x58] sm:$0xff]
        %v826 = vld [vmem:[%s2 + $0x60] sm:$0xff]
        %v827 = vld [vmem:[%s2 + $0x68] sm:$0xff]
        %v828 = vld [vmem:[%s2 + $0x70] sm:$0xff]
        %v829 = vld [vmem:[%s2 + $0x78] sm:$0xff]
        %830 = vmatprep.subr.mxu0 0.0
        %831 = vmatpush1.msra.mxu0 %v814
        %832 = vmatprep.subr.mxu0 0.0
        %833 = vmatpush1.msra.mxu0 %v815
        %834 = vmatprep.subr.mxu0 0.0
        %835 = vmatpush1.msra.mxu0 %v816
        %836 = vmatprep.subr.mxu0 0.0
        %837 = vmatpush1.msra.mxu0 %v817
        %838 = vmatprep.subr.mxu0 0.0
        %839 = vmatpush1.msra.mxu0 %v818
        %840 = vmatprep.subr.mxu0 0.0
        %841 = vmatpush1.msra.mxu0 %v819
        %842 = vmatprep.subr.mxu0 0.0
        %843 = vmatpush1.msra.mxu0 %v820
        %844 = vmatprep.subr.mxu0 0.0
        %845 = vmatpush1.msra.mxu0 %v821
        %846 = vmatprep.subr.mxu0 0.0
        %847 = vmatpush1.msra.mxu0 %v822
        %848 = vmatprep.subr.mxu0 0.0
        %849 = vmatpush1.msra.mxu0 %v823
        %850 = vmatprep.subr.mxu0 0.0
        %851 = vmatpush1.msra.mxu0 %v824
        %852 = vmatprep.subr.mxu0 0.0
        %853 = vmatpush1.msra.mxu0 %v825
        %854 = vmatprep.subr.mxu0 0.0
        %855 = vmatpush1.msra.mxu0 %v826
        %856 = vmatprep.subr.mxu0 0.0
        %857 = vmatpush1.msra.mxu0 %v827
        %858 = vmatprep.subr.mxu0 0.0
        %859 = vmatpush1.msra.mxu0 %v828
        %860 = vmatprep.subr.mxu0 0.0
        %861 = vmatpush1.msra.mxu0 %v829
        %862 = vmatprep.subr.mxu0 0.0
        %863 = vmatpush1.msra.mxu0 0.0
        %864 = vmatprep.subr.mxu0 0.0
        %865 = vmatpush1.msra.mxu0 0.0
        %866 = vmatprep.subr.mxu0 0.0
        %867 = vmatpush1.msra.mxu0 0.0
        %868 = vmatprep.subr.mxu0 0.0
        %869 = vmatpush1.msra.mxu0 0.0
        %870 = vmatprep.subr.mxu0 0.0
        %871 = vmatpush1.msra.mxu0 0.0
        %872 = vmatprep.subr.mxu0 0.0
        %873 = vmatpush1.msra.mxu0 0.0
        %874 = vmatprep.subr.mxu0 0.0
        %875 = vmatpush1.msra.mxu0 0.0
        %876 = vmatprep.subr.mxu0 0.0
        %877 = vmatpush1.msra.mxu0 0.0
        %878 = vmatprep.subr.mxu0 0.0
        %879 = vmatpush1.msra.mxu0 0.0
        %880 = vmatprep.subr.mxu0 0.0
        %881 = vmatpush1.msra.mxu0 0.0
        %882 = vmatprep.subr.mxu0 0.0
        %883 = vmatpush1.msra.mxu0 0.0
        %884 = vmatprep.subr.mxu0 0.0
        %885 = vmatpush1.msra.mxu0 0.0
        %886 = vmatprep.subr.mxu0 0.0
        %887 = vmatpush1.msra.mxu0 0.0
        %888 = vmatprep.subr.mxu0 0.0
        %889 = vmatpush1.msra.mxu0 0.0
        %890 = vmatprep.subr.mxu0 0.0
        %891 = vmatpush1.msra.mxu0 0.0
        %892 = vmatprep.subr.mxu0 0.0
        %893 = vmatpush1.msra.mxu0 0.0
        %894 = vmatprep.mubr.f32.mxu0 0.0
        %895 = vmatmul.mubr.f32.gmra.mrb[0].mxu0 %v812
        %v896 = vpop.f32.mrb[0].mxu0
        %v897 = vadd.f32 0.0, %v896
        %v898 = vpop.f32.mrb[0].mxu0
        %899 = vdwg.mxu0
        %v900 = vld [vmem:[%s6] sm:$0xff]
        %v901 = vld [vmem:[%s6 + $0x8] sm:$0xff]
        %v902 = vld [vmem:[%s6 + $0x10] sm:$0xff]
        %v903 = vld [vmem:[%s6 + $0x18] sm:$0xff]
        %v904 = vld [vmem:[%s6 + $0x20] sm:$0xff]
        %v905 = vld [vmem:[%s6 + $0x28] sm:$0xff]
        %v906 = vld [vmem:[%s6 + $0x30] sm:$0xff]
        %v907 = vld [vmem:[%s6 + $0x38] sm:$0xff]
        %v908 = vld [vmem:[%s6 + $0x40] sm:$0xff]
        %v909 = vld [vmem:[%s6 + $0x48] sm:$0xff]
        %v910 = vld [vmem:[%s6 + $0x50] sm:$0xff]
        %v911 = vld [vmem:[%s6 + $0x58] sm:$0xff]
        %v912 = vld [vmem:[%s6 + $0x60] sm:$0xff]
        %v913 = vld [vmem:[%s6 + $0x68] sm:$0xff]
        %v914 = vld [vmem:[%s6 + $0x70] sm:$0xff]
        %v915 = vld [vmem:[%s6 + $0x78] sm:$0xff]
        %v916 = vld [vmem:[%s7] sm:$0xff]
        %v917 = vld [vmem:[%s7 + $0x8] sm:$0xff]
        %v918 = vld [vmem:[%s7 + $0x10] sm:$0xff]
        %v919 = vld [vmem:[%s7 + $0x18] sm:$0xff]
        %v920 = vld [vmem:[%s7 + $0x20] sm:$0xff]
        %v921 = vld [vmem:[%s7 + $0x28] sm:$0xff]
        %v922 = vld [vmem:[%s7 + $0x30] sm:$0xff]
        %v923 = vld [vmem:[%s7 + $0x38] sm:$0xff]
        %v924 = vld [vmem:[%s7 + $0x40] sm:$0xff]
        %v925 = vld [vmem:[%s7 + $0x48] sm:$0xff]
        %v926 = vld [vmem:[%s7 + $0x50] sm:$0xff]
        %v927 = vld [vmem:[%s7 + $0x58] sm:$0xff]
        %v928 = vld [vmem:[%s7 + $0x60] sm:$0xff]
        %v929 = vld [vmem:[%s7 + $0x68] sm:$0xff]
        %v930 = vld [vmem:[%s7 + $0x70] sm:$0xff]
        %v931 = vld [vmem:[%s7 + $0x78] sm:$0xff]
        %932 = vmatprep.subr.mxu0 0.0
        %933 = vmatpush1.msra.mxu0 %v916
        %934 = vmatprep.subr.mxu0 0.0
        %935 = vmatpush1.msra.mxu0 %v917
        %936 = vmatprep.subr.mxu0 0.0
        %937 = vmatpush1.msra.mxu0 %v918
        %938 = vmatprep.subr.mxu0 0.0
        %939 = vmatpush1.msra.mxu0 %v919
        %940 = vmatprep.subr.mxu0 0.0
        %941 = vmatpush1.msra.mxu0 %v920
        %942 = vmatprep.subr.mxu0 0.0
        %943 = vmatpush1.msra.mxu0 %v921
        %944 = vmatprep.subr.mxu0 0.0
        %945 = vmatpush1.msra.mxu0 %v922
        %946 = vmatprep.subr.mxu0 0.0
        %947 = vmatpush1.msra.mxu0 %v923
        %948 = vmatprep.subr.mxu0 0.0
        %949 = vmatpush1.msra.mxu0 %v924
        %950 = vmatprep.subr.mxu0 0.0
        %951 = vmatpush1.msra.mxu0 %v925
        %952 = vmatprep.subr.mxu0 0.0
        %953 = vmatpush1.msra.mxu0 %v926
        %954 = vmatprep.subr.mxu0 0.0
        %955 = vmatpush1.msra.mxu0 %v927
        %956 = vmatprep.subr.mxu0 0.0
        %957 = vmatpush1.msra.mxu0 %v928
        %958 = vmatprep.subr.mxu0 0.0
        %959 = vmatpush1.msra.mxu0 %v929
        %960 = vmatprep.subr.mxu0 0.0
        %961 = vmatpush1.msra.mxu0 %v930
        %962 = vmatprep.subr.mxu0 0.0
        %963 = vmatpush1.msra.mxu0 %v931
        %964 = vmatprep.subr.mxu0 0.0
        %965 = vmatpush1.msra.mxu0 0.0
        %966 = vmatprep.subr.mxu0 0.0
        %967 = vmatpush1.msra.mxu0 0.0
        %968 = vmatprep.subr.mxu0 0.0
        %969 = vmatpush1.msra.mxu0 0.0
        %970 = vmatprep.subr.mxu0 0.0
        %971 = vmatpush1.msra.mxu0 0.0
        %972 = vmatprep.subr.mxu0 0.0
        %973 = vmatpush1.msra.mxu0 0.0
        %974 = vmatprep.subr.mxu0 0.0
        %975 = vmatpush1.msra.mxu0 0.0
        %976 = vmatprep.subr.mxu0 0.0
        %977 = vmatpush1.msra.mxu0 0.0
        %978 = vmatprep.subr.mxu0 0.0
        %979 = vmatpush1.msra.mxu0 0.0
        %980 = vmatprep.subr.mxu0 0.0
        %981 = vmatpush1.msra.mxu0 0.0
        %982 = vmatprep.subr.mxu0 0.0
        %983 = vmatpush1.msra.mxu0 0.0
        %984 = vmatprep.subr.mxu0 0.0
        %985 = vmatpush1.msra.mxu0 0.0
        %986 = vmatprep.subr.mxu0 0.0
        %987 = vmatpush1.msra.mxu0 0.0
        %988 = vmatprep.subr.mxu0 0.0
        %989 = vmatpush1.msra.mxu0 0.0
        %990 = vmatprep.subr.mxu0 0.0
        %991 = vmatpush1.msra.mxu0 0.0
        %992 = vmatprep.subr.mxu0 0.0
        %993 = vmatpush1.msra.mxu0 0.0
        %994 = vmatprep.subr.mxu0 0.0
        %995 = vmatpush1.msra.mxu0 0.0
        %996 = vmatprep.mubr.f32.mxu0 0.0
        %997 = vmatmul.mubr.f32.gmra.mrb[0].mxu0 %v897
        %v998 = vpop.f32.mrb[0].mxu0
        %v999 = vadd.f32 0.0, %v998
        %v1000 = vpop.f32.mrb[0].mxu0
        %1001 = vdwg.mxu0
        %1002 = vmatprep.subr.mxu0 0.0
        %1003 = vmatpush1.msra.mxu0 %v900
        %1004 = vmatprep.subr.mxu0 0.0
        %1005 = vmatpush1.msra.mxu0 %v901
        %1006 = vmatprep.subr.mxu0 0.0
        %1007 = vmatpush1.msra.mxu0 %v902
        %1008 = vmatprep.subr.mxu0 0.0
        %1009 = vmatpush1.msra.mxu0 %v903
        %1010 = vmatprep.subr.mxu0 0.0
        %1011 = vmatpush1.msra.mxu0 %v904
        %1012 = vmatprep.subr.mxu0 0.0
        %1013 = vmatpush1.msra.mxu0 %v905
        %1014 = vmatprep.subr.mxu0 0.0
        %1015 = vmatpush1.msra.mxu0 %v906
        %1016 = vmatprep.subr.mxu0 0.0
        %1017 = vmatpush1.msra.mxu0 %v907
        %1018 = vmatprep.subr.mxu0 0.0
        %1019 = vmatpush1.msra.mxu0 %v908
        %1020 = vmatprep.subr.mxu0 0.0
        %1021 = vmatpush1.msra.mxu0 %v909
        %1022 = vmatprep.subr.mxu0 0.0
        %1023 = vmatpush1.msra.mxu0 %v910
        %1024 = vmatprep.subr.mxu0 0.0
        %1025 = vmatpush1.msra.mxu0 %v911
        %1026 = vmatprep.subr.mxu0 0.0
        %1027 = vmatpush1.msra.mxu0 %v912
        %1028 = vmatprep.subr.mxu0 0.0
        %1029 = vmatpush1.msra.mxu0 %v913
        %1030 = vmatprep.subr.mxu0 0.0
        %1031 = vmatpush1.msra.mxu0 %v914
        %1032 = vmatprep.subr.mxu0 0.0
        %1033 = vmatpush1.msra.mxu0 %v915
        %1034 = vmatprep.subr.mxu0 0.0
        %1035 = vmatpush1.msra.mxu0 0.0
        %1036 = vmatprep.subr.mxu0 0.0
        %1037 = vmatpush1.msra.mxu0 0.0
        %1038 = vmatprep.subr.mxu0 0.0
        %1039 = vmatpush1.msra.mxu0 0.0
        %1040 = vmatprep.subr.mxu0 0.0
        %1041 = vmatpush1.msra.mxu0 0.0
        %1042 = vmatprep.subr.mxu0 0.0
        %1043 = vmatpush1.msra.mxu0 0.0
        %1044 = vmatprep.subr.mxu0 0.0
        %1045 = vmatpush1.msra.mxu0 0.0
        %1046 = vmatprep.subr.mxu0 0.0
        %1047 = vmatpush1.msra.mxu0 0.0
        %1048 = vmatprep.subr.mxu0 0.0
        %1049 = vmatpush1.msra.mxu0 0.0
        %1050 = vmatprep.subr.mxu0 0.0
        %1051 = vmatpush1.msra.mxu0 0.0
        %1052 = vmatprep.subr.mxu0 0.0
        %1053 = vmatpush1.msra.mxu0 0.0
        %1054 = vmatprep.subr.mxu0 0.0
        %1055 = vmatpush1.msra.mxu0 0.0
        %1056 = vmatprep.subr.mxu0 0.0
        %1057 = vmatpush1.msra.mxu0 0.0
        %1058 = vmatprep.subr.mxu0 0.0
        %1059 = vmatpush1.msra.mxu0 0.0
        %1060 = vmatprep.subr.mxu0 0.0
        %1061 = vmatpush1.msra.mxu0 0.0
        %1062 = vmatprep.subr.mxu0 0.0
        %1063 = vmatpush1.msra.mxu0 0.0
        %1064 = vmatprep.subr.mxu0 0.0
        %1065 = vmatpush1.msra.mxu0 0.0
        %1066 = vmatprep.mubr.f32.mxu0 0.0
        %1067 = vmatmul.mubr.f32.gmra.mrb[0].mxu0 %v618
        %v1068 = vpop.f32.mrb[0].mxu0
        %v1069 = vadd.f32 %v999, %v1068
        %v1070 = vpop.f32.mrb[0].mxu0
        %1071 = vdwg.mxu0
        %v1072 = vld [vmem:[%s8] sm:$0x1]
        %v1074 = vlaneseq
        %v1075 = vshrl.u32 %v1074, 7
        %v1076 = vsub.s32 0, %v1075
        %v1077 = vrot.slane %v1072, %v1076
        %v1079 = vadd.f32 %v1069, %v1077
        %v1080 = vmax.f32 %v1079, 0.0
        %v1081 = vld [vmem:[%s9] sm:$0xff]
        %v1082 = vld [vmem:[%s9 + $0x8] sm:$0xff]
        %v1083 = vld [vmem:[%s9 + $0x10] sm:$0xff]
        %v1084 = vld [vmem:[%s9 + $0x18] sm:$0xff]
        %v1085 = vld [vmem:[%s9 + $0x20] sm:$0xff]
        %v1086 = vld [vmem:[%s9 + $0x28] sm:$0xff]
        %v1087 = vld [vmem:[%s9 + $0x30] sm:$0xff]
        %v1088 = vld [vmem:[%s9 + $0x38] sm:$0xff]
        %v1089 = vld [vmem:[%s9 + $0x40] sm:$0xff]
        %v1090 = vld [vmem:[%s9 + $0x48] sm:$0xff]
        %v1091 = vld [vmem:[%s9 + $0x50] sm:$0xff]
        %v1092 = vld [vmem:[%s9 + $0x58] sm:$0xff]
        %v1093 = vld [vmem:[%s9 + $0x60] sm:$0xff]
        %v1094 = vld [vmem:[%s9 + $0x68] sm:$0xff]
        %v1095 = vld [vmem:[%s9 + $0x70] sm:$0xff]
        %v1096 = vld [vmem:[%s9 + $0x78] sm:$0xff]
        %v1097 = vld [vmem:[%s9 + $0x80] sm:$0xff]
        %v1098 = vld [vmem:[%s9 + $0x88] sm:$0xff]
        %v1099 = vld [vmem:[%s9 + $0x90] sm:$0xff]
        %v1100 = vld [vmem:[%s9 + $0x98] sm:$0xff]
        %v1101 = vld [vmem:[%s9 + $0xa0] sm:$0xff]
        %v1102 = vld [vmem:[%s9 + $0xa8] sm:$0xff]
        %v1103 = vld [vmem:[%s9 + $0xb0] sm:$0xff]
        %v1104 = vld [vmem:[%s9 + $0xb8] sm:$0xff]
        %v1105 = vld [vmem:[%s9 + $0xc0] sm:$0xff]
        %v1106 = vld [vmem:[%s9 + $0xc8] sm:$0xff]
        %v1107 = vld [vmem:[%s9 + $0xd0] sm:$0xff]
        %v1108 = vld [vmem:[%s9 + $0xd8] sm:$0xff]
        %v1109 = vld [vmem:[%s9 + $0xe0] sm:$0xff]
        %v1110 = vld [vmem:[%s9 + $0xe8] sm:$0xff]
        %v1111 = vld [vmem:[%s9 + $0xf0] sm:$0xff]
        %v1112 = vld [vmem:[%s9 + $0xf8] sm:$0xff]
        %v1113 = vld [vmem:[%s9 + $0x100] sm:$0xff]
        %v1114 = vld [vmem:[%s9 + $0x108] sm:$0xff]
        %v1115 = vld [vmem:[%s9 + $0x110] sm:$0xff]
        %v1116 = vld [vmem:[%s9 + $0x118] sm:$0xff]
        %v1117 = vld [vmem:[%s9 + $0x120] sm:$0xff]
        %v1118 = vld [vmem:[%s9 + $0x128] sm:$0xff]
        %v1119 = vld [vmem:[%s9 + $0x130] sm:$0xff]
        %v1120 = vld [vmem:[%s9 + $0x138] sm:$0xff]
        %v1121 = vld [vmem:[%s9 + $0x140] sm:$0xff]
        %v1122 = vld [vmem:[%s9 + $0x148] sm:$0xff]
        %v1123 = vld [vmem:[%s9 + $0x150] sm:$0xff]
        %v1124 = vld [vmem:[%s9 + $0x158] sm:$0xff]
        %v1125 = vld [vmem:[%s9 + $0x160] sm:$0xff]
        %v1126 = vld [vmem:[%s9 + $0x168] sm:$0xff]
        %v1127 = vld [vmem:[%s9 + $0x170] sm:$0xff]
        %v1128 = vld [vmem:[%s9 + $0x178] sm:$0xff]
        %v1129 = vld [vmem:[%s10] sm:$0x7]
        %v1131 = vlaneseq
        %v1132 = vshrl.u32 %v1131, 7
        %v1133 = vsub.s32 0, %v1132
        %v1134 = vrot.slane %v1129, %v1133
        %v1135 = vlaneseq
        %v1136 = vshrl.u32 %v1135, 7
        %v1137 = vsub.s32 1, %v1136
        %v1138 = vrot.slane %v1129, %v1137
        %v1139 = vlaneseq
        %v1140 = vshrl.u32 %v1139, 7
        %v1141 = vsub.s32 2, %v1140
        %v1142 = vrot.slane %v1129, %v1141
        %1146 = vmatprep.subr.mxu0 %v1082
        %1147 = vmatpush1.msra.mxu0 %v1081
        %1148 = vmatprep.subr.mxu0 %v1085
        %1149 = vmatpush1.msra.mxu0 %v1084
        %1150 = vmatprep.subr.mxu0 %v1088
        %1151 = vmatpush1.msra.mxu0 %v1087
        %1152 = vmatprep.subr.mxu0 %v1091
        %1153 = vmatpush1.msra.mxu0 %v1090
        %1154 = vmatprep.subr.mxu0 %v1094
        %1155 = vmatpush1.msra.mxu0 %v1093
        %1156 = vmatprep.subr.mxu0 %v1097
        %1157 = vmatpush1.msra.mxu0 %v1096
        %1158 = vmatprep.subr.mxu0 %v1100
        %1159 = vmatpush1.msra.mxu0 %v1099
        %1160 = vmatprep.subr.mxu0 %v1103
        %1161 = vmatpush1.msra.mxu0 %v1102
        %1162 = vmatprep.subr.mxu0 %v1106
        %1163 = vmatpush1.msra.mxu0 %v1105
        %1164 = vmatprep.subr.mxu0 %v1109
        %1165 = vmatpush1.msra.mxu0 %v1108
        %1166 = vmatprep.subr.mxu0 %v1112
        %1167 = vmatpush1.msra.mxu0 %v1111
        %1168 = vmatprep.subr.mxu0 %v1115
        %1169 = vmatpush1.msra.mxu0 %v1114
        %1170 = vmatprep.subr.mxu0 %v1118
        %1171 = vmatpush1.msra.mxu0 %v1117
        %1172 = vmatprep.subr.mxu0 %v1121
        %1173 = vmatpush1.msra.mxu0 %v1120
        %1174 = vmatprep.subr.mxu0 %v1124
        %1175 = vmatpush1.msra.mxu0 %v1123
        %1176 = vmatprep.subr.mxu0 %v1127
        %1177 = vmatpush1.msra.mxu0 %v1126
        %1178 = vmatprep.subr.mxu0 0.0
        %1179 = vmatpush1.msra.mxu0 0.0
        %1180 = vmatprep.subr.mxu0 0.0
        %1181 = vmatpush1.msra.mxu0 0.0
        %1182 = vmatprep.subr.mxu0 0.0
        %1183 = vmatpush1.msra.mxu0 0.0
        %1184 = vmatprep.subr.mxu0 0.0
        %1185 = vmatpush1.msra.mxu0 0.0
        %1186 = vmatprep.subr.mxu0 0.0
        %1187 = vmatpush1.msra.mxu0 0.0
        %1188 = vmatprep.subr.mxu0 0.0
        %1189 = vmatpush1.msra.mxu0 0.0
        %1190 = vmatprep.subr.mxu0 0.0
        %1191 = vmatpush1.msra.mxu0 0.0
        %1192 = vmatprep.subr.mxu0 0.0
        %1193 = vmatpush1.msra.mxu0 0.0
        %1194 = vmatprep.subr.mxu0 0.0
        %1195 = vmatpush1.msra.mxu0 0.0
        %1196 = vmatprep.subr.mxu0 0.0
        %1197 = vmatpush1.msra.mxu0 0.0
        %1198 = vmatprep.subr.mxu0 0.0
        %1199 = vmatpush1.msra.mxu0 0.0
        %1200 = vmatprep.subr.mxu0 0.0
        %1201 = vmatpush1.msra.mxu0 0.0
        %1202 = vmatprep.subr.mxu0 0.0
        %1203 = vmatpush1.msra.mxu0 0.0
        %1204 = vmatprep.subr.mxu0 0.0
        %1205 = vmatpush1.msra.mxu0 0.0
        %1206 = vmatprep.subr.mxu0 0.0
        %1207 = vmatpush1.msra.mxu0 0.0
        %1208 = vmatprep.subr.mxu0 0.0
        %1209 = vmatpush1.msra.mxu0 0.0
        %1210 = vmatprep.mubr.f32.mxu0 0.0
        %1211 = vmatmul.mubr.f32.gmra.mrb[0].mxu0 %v1080
        %v1212 = vpop.f32.mrb[0].mxu0
        %v1213 = vadd.f32 %v1134, %v1212
        %v1214 = vpop.f32.mrb[0].mxu0
        %v1215 = vadd.f32 %v1138, %v1214
        %1216 = vdwg.mxu0
        %1217 = vmatprep.subr.mxu0 0.0
        %1218 = vmatpush1.msra.mxu0 %v1083
        %1219 = vmatprep.subr.mxu0 0.0
        %1220 = vmatpush1.msra.mxu0 %v1086
        %1221 = vmatprep.subr.mxu0 0.0
        %1222 = vmatpush1.msra.mxu0 %v1089
        %1223 = vmatprep.subr.mxu0 0.0
        %1224 = vmatpush1.msra.mxu0 %v1092
        %1225 = vmatprep.subr.mxu0 0.0
        %1226 = vmatpush1.msra.mxu0 %v1095
        %1227 = vmatprep.subr.mxu0 0.0
        %1228 = vmatpush1.msra.mxu0 %v1098
        %1229 = vmatprep.subr.mxu0 0.0
        %1230 = vmatpush1.msra.mxu0 %v1101
        %1231 = vmatprep.subr.mxu0 0.0
        %1232 = vmatpush1.msra.mxu0 %v1104
        %1233 = vmatprep.subr.mxu0 0.0
        %1234 = vmatpush1.msra.mxu0 %v1107
        %1235 = vmatprep.subr.mxu0 0.0
        %1236 = vmatpush1.msra.mxu0 %v1110
        %1237 = vmatprep.subr.mxu0 0.0
        %1238 = vmatpush1.msra.mxu0 %v1113
        %1239 = vmatprep.subr.mxu0 0.0
        %1240 = vmatpush1.msra.mxu0 %v1116
        %1241 = vmatprep.subr.mxu0 0.0
        %1242 = vmatpush1.msra.mxu0 %v1119
        %1243 = vmatprep.subr.mxu0 0.0
        %1244 = vmatpush1.msra.mxu0 %v1122
        %1245 = vmatprep.subr.mxu0 0.0
        %1246 = vmatpush1.msra.mxu0 %v1125
        %1247 = vmatprep.subr.mxu0 0.0
        %1248 = vmatpush1.msra.mxu0 %v1128
        %1249 = vmatprep.subr.mxu0 0.0
        %1250 = vmatpush1.msra.mxu0 0.0
        %1251 = vmatprep.subr.mxu0 0.0
        %1252 = vmatpush1.msra.mxu0 0.0
        %1253 = vmatprep.subr.mxu0 0.0
        %1254 = vmatpush1.msra.mxu0 0.0
        %1255 = vmatprep.subr.mxu0 0.0
        %1256 = vmatpush1.msra.mxu0 0.0
        %1257 = vmatprep.subr.mxu0 0.0
        %1258 = vmatpush1.msra.mxu0 0.0
        %1259 = vmatprep.subr.mxu0 0.0
        %1260 = vmatpush1.msra.mxu0 0.0
        %1261 = vmatprep.subr.mxu0 0.0
        %1262 = vmatpush1.msra.mxu0 0.0
        %1263 = vmatprep.subr.mxu0 0.0
        %1264 = vmatpush1.msra.mxu0 0.0
        %1265 = vmatprep.subr.mxu0 0.0
        %1266 = vmatpush1.msra.mxu0 0.0
        %1267 = vmatprep.subr.mxu0 0.0
        %1268 = vmatpush1.msra.mxu0 0.0
        %1269 = vmatprep.subr.mxu0 0.0
        %1270 = vmatpush1.msra.mxu0 0.0
        %1271 = vmatprep.subr.mxu0 0.0
        %1272 = vmatpush1.msra.mxu0 0.0
        %1273 = vmatprep.subr.mxu0 0.0
        %1274 = vmatpush1.msra.mxu0 0.0
        %1275 = vmatprep.subr.mxu0 0.0
        %1276 = vmatpush1.msra.mxu0 0.0
        %1277 = vmatprep.subr.mxu0 0.0
        %1278 = vmatpush1.msra.mxu0 0.0
        %1279 = vmatprep.subr.mxu0 0.0
        %1280 = vmatpush1.msra.mxu0 0.0
        %1281 = vmatprep.mubr.f32.mxu0 0.0
        %1282 = vmatmul.mubr.f32.gmra.mrb[0].mxu0 %v1080
        %v1283 = vpop.f32.mrb[0].mxu0
        %v1284 = vadd.f32 %v1142, %v1283
        %v1285 = vpop.f32.mrb[0].mxu0
        %1286 = vdwg.mxu0
        %v1287 = vld [vmem:[%s11] sm:$0xff]
        %v1288 = vld [vmem:[%s11 + $0x8] sm:$0xff]
        %v1289 = vld [vmem:[%s11 + $0x10] sm:$0xff]
        %v1290 = vld [vmem:[%s11 + $0x18] sm:$0xff]
        %v1291 = vld [vmem:[%s11 + $0x20] sm:$0xff]
        %v1292 = vld [vmem:[%s11 + $0x28] sm:$0xff]
        %v1293 = vld [vmem:[%s11 + $0x30] sm:$0xff]
        %v1294 = vld [vmem:[%s11 + $0x38] sm:$0xff]
        %v1295 = vld [vmem:[%s11 + $0x40] sm:$0xff]
        %v1296 = vld [vmem:[%s11 + $0x48] sm:$0xff]
        %v1297 = vld [vmem:[%s11 + $0x50] sm:$0xff]
        %v1298 = vld [vmem:[%s11 + $0x58] sm:$0xff]
        %v1299 = vld [vmem:[%s11 + $0x60] sm:$0xff]
        %v1300 = vld [vmem:[%s11 + $0x68] sm:$0xff]
        %v1301 = vld [vmem:[%s11 + $0x70] sm:$0xff]
        %v1302 = vld [vmem:[%s11 + $0x78] sm:$0xff]
        %v1303 = vld [vmem:[%s11 + $0x80] sm:$0xff]
        %v1304 = vld [vmem:[%s11 + $0x88] sm:$0xff]
        %v1305 = vld [vmem:[%s11 + $0x90] sm:$0xff]
        %v1306 = vld [vmem:[%s11 + $0x98] sm:$0xff]
        %v1307 = vld [vmem:[%s11 + $0xa0] sm:$0xff]
        %v1308 = vld [vmem:[%s11 + $0xa8] sm:$0xff]
        %v1309 = vld [vmem:[%s11 + $0xb0] sm:$0xff]
        %v1310 = vld [vmem:[%s11 + $0xb8] sm:$0xff]
        %v1311 = vld [vmem:[%s11 + $0xc0] sm:$0xff]
        %v1312 = vld [vmem:[%s11 + $0xc8] sm:$0xff]
        %v1313 = vld [vmem:[%s11 + $0xd0] sm:$0xff]
        %v1314 = vld [vmem:[%s11 + $0xd8] sm:$0xff]
        %v1315 = vld [vmem:[%s11 + $0xe0] sm:$0xff]
        %v1316 = vld [vmem:[%s11 + $0xe8] sm:$0xff]
        %v1317 = vld [vmem:[%s11 + $0xf0] sm:$0xff]
        %v1318 = vld [vmem:[%s11 + $0xf8] sm:$0xff]
        %v1319 = vld [vmem:[%s11 + $0x100] sm:$0xff]
        %v1320 = vld [vmem:[%s11 + $0x108] sm:$0xff]
        %v1321 = vld [vmem:[%s11 + $0x110] sm:$0xff]
        %v1322 = vld [vmem:[%s11 + $0x118] sm:$0xff]
        %v1323 = vld [vmem:[%s11 + $0x120] sm:$0xff]
        %v1324 = vld [vmem:[%s11 + $0x128] sm:$0xff]
        %v1325 = vld [vmem:[%s11 + $0x130] sm:$0xff]
        %v1326 = vld [vmem:[%s11 + $0x138] sm:$0xff]
        %v1327 = vld [vmem:[%s11 + $0x140] sm:$0xff]
        %v1328 = vld [vmem:[%s11 + $0x148] sm:$0xff]
        %v1329 = vld [vmem:[%s11 + $0x150] sm:$0xff]
        %v1330 = vld [vmem:[%s11 + $0x158] sm:$0xff]
        %v1331 = vld [vmem:[%s11 + $0x160] sm:$0xff]
        %v1332 = vld [vmem:[%s11 + $0x168] sm:$0xff]
        %v1333 = vld [vmem:[%s11 + $0x170] sm:$0xff]
        %v1334 = vld [vmem:[%s11 + $0x178] sm:$0xff]
        %v1335 = vld [vmem:[%s12] sm:$0x7]
        %v1337 = vlaneseq
        %v1338 = vshrl.u32 %v1337, 7
        %v1339 = vsub.s32 0, %v1338
        %v1340 = vrot.slane %v1335, %v1339
        %v1341 = vlaneseq
        %v1342 = vshrl.u32 %v1341, 7
        %v1343 = vsub.s32 1, %v1342
        %v1344 = vrot.slane %v1335, %v1343
        %v1345 = vlaneseq
        %v1346 = vshrl.u32 %v1345, 7
        %v1347 = vsub.s32 2, %v1346
        %v1348 = vrot.slane %v1335, %v1347
        %1352 = vmatprep.subr.mxu0 %v1288
        %1353 = vmatpush1.msra.mxu0 %v1287
        %1354 = vmatprep.subr.mxu0 %v1291
        %1355 = vmatpush1.msra.mxu0 %v1290
        %1356 = vmatprep.subr.mxu0 %v1294
        %1357 = vmatpush1.msra.mxu0 %v1293
        %1358 = vmatprep.subr.mxu0 %v1297
        %1359 = vmatpush1.msra.mxu0 %v1296
        %1360 = vmatprep.subr.mxu0 %v1300
        %1361 = vmatpush1.msra.mxu0 %v1299
        %1362 = vmatprep.subr.mxu0 %v1303
        %1363 = vmatpush1.msra.mxu0 %v1302
        %1364 = vmatprep.subr.mxu0 %v1306
        %1365 = vmatpush1.msra.mxu0 %v1305
        %1366 = vmatprep.subr.mxu0 %v1309
        %1367 = vmatpush1.msra.mxu0 %v1308
        %1368 = vmatprep.subr.mxu0 %v1312
        %1369 = vmatpush1.msra.mxu0 %v1311
        %1370 = vmatprep.subr.mxu0 %v1315
        %1371 = vmatpush1.msra.mxu0 %v1314
        %1372 = vmatprep.subr.mxu0 %v1318
        %1373 = vmatpush1.msra.mxu0 %v1317
        %1374 = vmatprep.subr.mxu0 %v1321
        %1375 = vmatpush1.msra.mxu0 %v1320
        %1376 = vmatprep.subr.mxu0 %v1324
        %1377 = vmatpush1.msra.mxu0 %v1323
        %1378 = vmatprep.subr.mxu0 %v1327
        %1379 = vmatpush1.msra.mxu0 %v1326
        %1380 = vmatprep.subr.mxu0 %v1330
        %1381 = vmatpush1.msra.mxu0 %v1329
        %1382 = vmatprep.subr.mxu0 %v1333
        %1383 = vmatpush1.msra.mxu0 %v1332
        %1384 = vmatprep.subr.mxu0 0.0
        %1385 = vmatpush1.msra.mxu0 0.0
        %1386 = vmatprep.subr.mxu0 0.0
        %1387 = vmatpush1.msra.mxu0 0.0
        %1388 = vmatprep.subr.mxu0 0.0
        %1389 = vmatpush1.msra.mxu0 0.0
        %1390 = vmatprep.subr.mxu0 0.0
        %1391 = vmatpush1.msra.mxu0 0.0
        %1392 = vmatprep.subr.mxu0 0.0
        %1393 = vmatpush1.msra.mxu0 0.0
        %1394 = vmatprep.subr.mxu0 0.0
        %1395 = vmatpush1.msra.mxu0 0.0
        %1396 = vmatprep.subr.mxu0 0.0
        %1397 = vmatpush1.msra.mxu0 0.0
        %1398 = vmatprep.subr.mxu0 0.0
        %1399 = vmatpush1.msra.mxu0 0.0
        %1400 = vmatprep.subr.mxu0 0.0
        %1401 = vmatpush1.msra.mxu0 0.0
        %1402 = vmatprep.subr.mxu0 0.0
        %1403 = vmatpush1.msra.mxu0 0.0
        %1404 = vmatprep.subr.mxu0 0.0
        %1405 = vmatpush1.msra.mxu0 0.0
        %1406 = vmatprep.subr.mxu0 0.0
        %1407 = vmatpush1.msra.mxu0 0.0
        %1408 = vmatprep.subr.mxu0 0.0
        %1409 = vmatpush1.msra.mxu0 0.0
        %1410 = vmatprep.subr.mxu0 0.0
        %1411 = vmatpush1.msra.mxu0 0.0
        %1412 = vmatprep.subr.mxu0 0.0
        %1413 = vmatpush1.msra.mxu0 0.0
        %1414 = vmatprep.subr.mxu0 0.0
        %1415 = vmatpush1.msra.mxu0 0.0
        %1416 = vmatprep.mubr.f32.mxu0 0.0
        %1417 = vmatmul.mubr.f32.gmra.mrb[0].mxu0 %v619
        %v1418 = vpop.f32.mrb[0].mxu0
        %v1419 = vadd.f32 %v1340, %v1418
        %v1420 = vpop.f32.mrb[0].mxu0
        %v1421 = vadd.f32 %v1344, %v1420
        %1422 = vdwg.mxu0
        %1423 = vmatprep.subr.mxu0 0.0
        %1424 = vmatpush1.msra.mxu0 %v1289
        %1425 = vmatprep.subr.mxu0 0.0
        %1426 = vmatpush1.msra.mxu0 %v1292
        %1427 = vmatprep.subr.mxu0 0.0
        %1428 = vmatpush1.msra.mxu0 %v1295
        %1429 = vmatprep.subr.mxu0 0.0
        %1430 = vmatpush1.msra.mxu0 %v1298
        %1431 = vmatprep.subr.mxu0 0.0
        %1432 = vmatpush1.msra.mxu0 %v1301
        %1433 = vmatprep.subr.mxu0 0.0
        %1434 = vmatpush1.msra.mxu0 %v1304
        %1435 = vmatprep.subr.mxu0 0.0
        %1436 = vmatpush1.msra.mxu0 %v1307
        %1437 = vmatprep.subr.mxu0 0.0
        %1438 = vmatpush1.msra.mxu0 %v1310
        %1439 = vmatprep.subr.mxu0 0.0
        %1440 = vmatpush1.msra.mxu0 %v1313
        %1441 = vmatprep.subr.mxu0 0.0
        %1442 = vmatpush1.msra.mxu0 %v1316
        %1443 = vmatprep.subr.mxu0 0.0
        %1444 = vmatpush1.msra.mxu0 %v1319
        %1445 = vmatprep.subr.mxu0 0.0
        %1446 = vmatpush1.msra.mxu0 %v1322
        %1447 = vmatprep.subr.mxu0 0.0
        %1448 = vmatpush1.msra.mxu0 %v1325
        %1449 = vmatprep.subr.mxu0 0.0
        %1450 = vmatpush1.msra.mxu0 %v1328
        %1451 = vmatprep.subr.mxu0 0.0
        %1452 = vmatpush1.msra.mxu0 %v1331
        %1453 = vmatprep.subr.mxu0 0.0
        %1454 = vmatpush1.msra.mxu0 %v1334
        %1455 = vmatprep.subr.mxu0 0.0
        %1456 = vmatpush1.msra.mxu0 0.0
        %1457 = vmatprep.subr.mxu0 0.0
        %1458 = vmatpush1.msra.mxu0 0.0
        %1459 = vmatprep.subr.mxu0 0.0
        %1460 = vmatpush1.msra.mxu0 0.0
        %1461 = vmatprep.subr.mxu0 0.0
        %1462 = vmatpush1.msra.mxu0 0.0
        %1463 = vmatprep.subr.mxu0 0.0
        %1464 = vmatpush1.msra.mxu0 0.0
        %1465 = vmatprep.subr.mxu0 0.0
        %1466 = vmatpush1.msra.mxu0 0.0
        %1467 = vmatprep.subr.mxu0 0.0
        %1468 = vmatpush1.msra.mxu0 0.0
        %1469 = vmatprep.subr.mxu0 0.0
        %1470 = vmatpush1.msra.mxu0 0.0
        %1471 = vmatprep.subr.mxu0 0.0
        %1472 = vmatpush1.msra.mxu0 0.0
        %1473 = vmatprep.subr.mxu0 0.0
        %1474 = vmatpush1.msra.mxu0 0.0
        %1475 = vmatprep.subr.mxu0 0.0
        %1476 = vmatpush1.msra.mxu0 0.0
        %1477 = vmatprep.subr.mxu0 0.0
        %1478 = vmatpush1.msra.mxu0 0.0
        %1479 = vmatprep.subr.mxu0 0.0
        %1480 = vmatpush1.msra.mxu0 0.0
        %1481 = vmatprep.subr.mxu0 0.0
        %1482 = vmatpush1.msra.mxu0 0.0
        %1483 = vmatprep.subr.mxu0 0.0
        %1484 = vmatpush1.msra.mxu0 0.0
        %1485 = vmatprep.subr.mxu0 0.0
        %1486 = vmatpush1.msra.mxu0 0.0
        %1487 = vmatprep.mubr.f32.mxu0 0.0
        %1488 = vmatmul.mubr.f32.gmra.mrb[0].mxu0 %v619
        %v1489 = vpop.f32.mrb[0].mxu0
        %v1490 = vadd.f32 %v1348, %v1489
        %v1491 = vpop.f32.mrb[0].mxu0
        %1492 = vdwg.mxu0
        %v1493 = vadd.f32 %v1213, %v1419
        %v1494 = vxor.u32 %v1493, 2147483648
        %v1495 = vmul.f32 %v1494, 1.442695
        %v1496 = vpow.pop %v1495
        %v1497 = vadd.f32 %v1496, 1.0
        %v1498 = vrcp.pop %v1497
        %v1499 = vmul.f32 1.0, %v1498
        %v1500 = vadd.f32 %v1215, %v1421
        %v1501 = vxor.u32 %v1500, 2147483648
        %v1502 = vmul.f32 %v1501, 1.442695
        %v1503 = vpow.pop %v1502
        %v1504 = vadd.f32 %v1503, 1.0
        %v1505 = vrcp.pop %v1504
        %v1506 = vmul.f32 1.0, %v1505
        %v1507 = vmul.f32 %v1499, %v1490
        %v1508 = vadd.f32 %v1284, %v1507
        %v1509 = vtanh.pop %v1508
        %v1510 = vsub.f32 1.0, %v1506
        %v1511 = vmul.f32 %v1510, %v1509
        %v1512 = vmul.f32 %v1506, %v619
        %v1513 = vadd.f32 %v1511, %v1512
        %1514 = vst [vmem:[#allocation2] sm:$0xff] %v1513
        %1515 = vst [vmem:[%s611] sm:$0xff] %v1513
        %v1516 = vld [vmem:[%s13] sm:$0xff]
        %v1517 = vld [vmem:[%s13 + $0x8] sm:$0xff]
        %v1518 = vld [vmem:[%s13 + $0x10] sm:$0xff]
        %v1519 = vld [vmem:[%s13 + $0x18] sm:$0xff]
        %v1520 = vld [vmem:[%s13 + $0x20] sm:$0xff]
        %v1521 = vld [vmem:[%s13 + $0x28] sm:$0xff]
        %v1522 = vld [vmem:[%s13 + $0x30] sm:$0xff]
        %v1523 = vld [vmem:[%s13 + $0x38] sm:$0xff]
        %v1524 = vld [vmem:[%s13 + $0x40] sm:$0xff]
        %v1525 = vld [vmem:[%s13 + $0x48] sm:$0xff]
        %v1526 = vld [vmem:[%s13 + $0x50] sm:$0xff]
        %v1527 = vld [vmem:[%s13 + $0x58] sm:$0xff]
        %v1528 = vld [vmem:[%s13 + $0x60] sm:$0xff]
        %v1529 = vld [vmem:[%s13 + $0x68] sm:$0xff]
        %v1530 = vld [vmem:[%s13 + $0x70] sm:$0xff]
        %v1531 = vld [vmem:[%s13 + $0x78] sm:$0xff]
        %v1532 = vld [vmem:[%s14] sm:$0x1]
        %v1534 = vlaneseq
        %v1535 = vshrl.u32 %v1534, 7
        %v1536 = vsub.s32 0, %v1535
        %v1537 = vrot.slane %v1532, %v1536
        %1539 = vmatprep.subr.mxu0 0.0
        %1540 = vmatpush1.msra.mxu0 %v1516
        %1541 = vmatprep.subr.mxu0 0.0
        %1542 = vmatpush1.msra.mxu0 %v1517
        %1543 = vmatprep.subr.mxu0 0.0
        %1544 = vmatpush1.msra.mxu0 %v1518
        %1545 = vmatprep.subr.mxu0 0.0
        %1546 = vmatpush1.msra.mxu0 %v1519
        %1547 = vmatprep.subr.mxu0 0.0
        %1548 = vmatpush1.msra.mxu0 %v1520
        %1549 = vmatprep.subr.mxu0 0.0
        %1550 = vmatpush1.msra.mxu0 %v1521
        %1551 = vmatprep.subr.mxu0 0.0
        %1552 = vmatpush1.msra.mxu0 %v1522
        %1553 = vmatprep.subr.mxu0 0.0
        %1554 = vmatpush1.msra.mxu0 %v1523
        %1555 = vmatprep.subr.mxu0 0.0
        %1556 = vmatpush1.msra.mxu0 %v1524
        %1557 = vmatprep.subr.mxu0 0.0
        %1558 = vmatpush1.msra.mxu0 %v1525
        %1559 = vmatprep.subr.mxu0 0.0
        %1560 = vmatpush1.msra.mxu0 %v1526
        %1561 = vmatprep.subr.mxu0 0.0
        %1562 = vmatpush1.msra.mxu0 %v1527
        %1563 = vmatprep.subr.mxu0 0.0
        %1564 = vmatpush1.msra.mxu0 %v1528
        %1565 = vmatprep.subr.mxu0 0.0
        %1566 = vmatpush1.msra.mxu0 %v1529
        %1567 = vmatprep.subr.mxu0 0.0
        %1568 = vmatpush1.msra.mxu0 %v1530
        %1569 = vmatprep.subr.mxu0 0.0
        %1570 = vmatpush1.msra.mxu0 %v1531
        %1571 = vmatprep.subr.mxu0 0.0
        %1572 = vmatpush1.msra.mxu0 0.0
        %1573 = vmatprep.subr.mxu0 0.0
        %1574 = vmatpush1.msra.mxu0 0.0
        %1575 = vmatprep.subr.mxu0 0.0
        %1576 = vmatpush1.msra.mxu0 0.0
        %1577 = vmatprep.subr.mxu0 0.0
        %1578 = vmatpush1.msra.mxu0 0.0
        %1579 = vmatprep.subr.mxu0 0.0
        %1580 = vmatpush1.msra.mxu0 0.0
        %1581 = vmatprep.subr.mxu0 0.0
        %1582 = vmatpush1.msra.mxu0 0.0
        %1583 = vmatprep.subr.mxu0 0.0
        %1584 = vmatpush1.msra.mxu0 0.0
        %1585 = vmatprep.subr.mxu0 0.0
        %1586 = vmatpush1.msra.mxu0 0.0
        %1587 = vmatprep.subr.mxu0 0.0
        %1588 = vmatpush1.msra.mxu0 0.0
        %1589 = vmatprep.subr.mxu0 0.0
        %1590 = vmatpush1.msra.mxu0 0.0
        %1591 = vmatprep.subr.mxu0 0.0
        %1592 = vmatpush1.msra.mxu0 0.0
        %1593 = vmatprep.subr.mxu0 0.0
        %1594 = vmatpush1.msra.mxu0 0.0
        %1595 = vmatprep.subr.mxu0 0.0
        %1596 = vmatpush1.msra.mxu0 0.0
        %1597 = vmatprep.subr.mxu0 0.0
        %1598 = vmatpush1.msra.mxu0 0.0
        %1599 = vmatprep.subr.mxu0 0.0
        %1600 = vmatpush1.msra.mxu0 0.0
        %1601 = vmatprep.subr.mxu0 0.0
        %1602 = vmatpush1.msra.mxu0 0.0
        %1603 = vmatprep.mubr.f32.mxu0 0.0
        %1604 = vmatmul.mubr.f32.gmra.mrb[0].mxu0 %v1513
        %v1605 = vpop.f32.mrb[0].mxu0
        %v1606 = vadd.f32 %v1537, %v1605
        %v1607 = vpop.f32.mrb[0].mxu0
        %1608 = vdwg.mxu0
        %vm1609 = vcmp.lt.s32.totalorder %v801, 80
        %v1610 = vsel %vm1609, %v1606, -1e+30
        %1611 = vmax.xlane.f32.xlu0 %v1610
        %v1612 = vpop.xlane.xlu0 %1611
        %v1613 = vsub.f32 %v1610, %v1612
        %v1614 = vmul.f32 %v1613, 1.442695
        %v1615 = vpow.pop %v1614
        %1616 = vadd.xlane.f32.xlu0 %v1615
        %v1617 = vpop.xlane.xlu0 %1616
        %v1618 = vlog2.pop %v1617
        %v1619 = vmul.f32 %v1618, 0.6931472
        %v1620 = vadd.f32 %v1619, %v1612
        %v1621 = vsub.f32 %v1610, %v1620
        %1622 = vst [vmem:[%s582] sm:$0xff] %v1621
        %s1623 = sand.u32 %s384, 1
        %s1624 = scalar_lea.sflag [#allocation4], %s1623
        %s1625 = sand.u32 %s384, 1
        %s1626 = smul.addr %s1625, 8
        %s1627 = scalar_lea.vmem [#allocation3], %s1626
        %p1628 = scmp.lt.s32.totalorder %s39, 1
        %s1629 = scalar_select %p1628, %s39, 1
        %s1630 = smul.addr %s1629, 8
        %s1631 = scalar_lea.vmem %s16, %s1630
        %s1632 = sand.u32 %s438, 1
        %s1633 = scalar_lea.sflag [#allocation6], %s1632
        %s1634 = sand.u32 %s438, 1
        %s1635 = smul.addr %s1634, 8
        %s1636 = scalar_lea.vmem [#allocation5], %s1635
        // Predicated region
        $region85: #{decoder_decode.1} parent=79 // pred_check
          %p1637 = pneg %p394
        $region86: #{decoder_decode.1} parent=79 // pred_check_branch
          %1639 = sbr.rel (%p1637) target = $region88
        $region87: #{decoder_decode.1} parent=79 // pred_region
          %s1641 = ssub.s32 128, 128
          %1642 = vsyncadd %s1624, %s1641
          %s1643 = smul.addr %s40, 2
          %s1644 = sadd.s32 %s39, %s1643
          %s1645 = smul.addr %s1644, 128
          %s1646 = scalar_lea.hbm %s15, %s1645
          %s1648 = sshll.u32 %s1627, 4
          %s1649 = int_to_ptr.vmem [resolvable:$true] %s1648
          %1651 = dma.vmem_to_hbm [thread:$0]  %s1649, 128, %s1646, %s1624
        $region88: #{decoder_decode.1} parent=79 // pred_fallthru
          _
        // Predicated region
        $region89: #{decoder_decode.1} parent=79 // pred_check
          %p1652 = pneg %p420
        $region90: #{decoder_decode.1} parent=79 // pred_check_branch
          %1654 = sbr.rel (%p1652) target = $region92
        $region91: #{decoder_decode.1} parent=79 // pred_region
          _
        $region92: #{decoder_decode.1} parent=79 // pred_fallthru
          _
        // Predicated region
        $region93: #{decoder_decode.1} parent=79 // pred_check
          %p1655 = pneg %p448
        $region94: #{decoder_decode.1} parent=79 // pred_check_branch
          %1657 = sbr.rel (%p1655) target = $region96
        $region95: #{decoder_decode.1} parent=79 // pred_region
          %s1659 = ssub.s32 128, 128
          %1660 = vsyncadd %s1633, %s1659
          %s1661 = smul.addr %s40, 2
          %s1662 = sadd.s32 %s39, %s1661
          %s1663 = smul.addr %s1662, 128
          %s1664 = scalar_lea.hbm %s17, %s1663
          %s1666 = sshll.u32 %s1636, 4
          %s1667 = int_to_ptr.vmem [resolvable:$true] %s1666
          %1669 = dma.vmem_to_hbm [thread:$0]  %s1667, 128, %s1664, %s1633
        $region96: #{decoder_decode.1} parent=79 // pred_fallthru
          _
      $region80: #{decoder_decode.1} parent=5 // pred_fallthru
        _
      %p1670 = scmp.le.s32.totalorder 2, %s30
      // Predicated region
      $region97: #{decoder_decode.1} parent=5 // pred_check
        %p1671 = pneg %p1670
      $region98: #{decoder_decode.1} parent=5 // pred_check_branch
        %1673 = sbr.rel (%p1671) target = $region100
      $region99: #{decoder_decode.1} parent=5 // pred_region
        %s1674 = ssub.s32 %s30, 2
        // Predicated region
        $region101: #{decoder_decode.1} parent=99 // pred_check
          %p1675 = pneg %p400
        $region102: #{decoder_decode.1} parent=99 // pred_check_branch
          %1677 = sbr.rel (%p1675) target = $region104
        $region103: #{decoder_decode.1} parent=99 // pred_region
          %s1678 = sand.u32 %s385, 1
          %s1679 = scalar_lea.sflag [#allocation4], %s1678
          %s1680 = sand.u32 %s385, 1
          %s1681 = smul.addr %s1680, 8
          %s1682 = scalar_lea.vmem [#allocation3], %s1681
          %1683 = dma.done %s1679, 128
        $region104: #{decoder_decode.1} parent=99 // pred_fallthru
          _
        // Predicated region
        $region105: #{decoder_decode.1} parent=99 // pred_check
          %p1684 = pneg %p426
        $region106: #{decoder_decode.1} parent=99 // pred_check_branch
          %1686 = sbr.rel (%p1684) target = $region108
        $region107: #{decoder_decode.1} parent=99 // pred_region
          %p1687 = scmp.lt.s32.totalorder %s41, 1
          %s1688 = scalar_select %p1687, %s41, 1
          %s1689 = smul.addr %s1688, 8
          %s1690 = scalar_lea.vmem %s16, %s1689
        $region108: #{decoder_decode.1} parent=99 // pred_fallthru
          _
        // Predicated region
        $region109: #{decoder_decode.1} parent=99 // pred_check
          %p1691 = pneg %p454
        $region110: #{decoder_decode.1} parent=99 // pred_check_branch
          %1693 = sbr.rel (%p1691) target = $region112
        $region111: #{decoder_decode.1} parent=99 // pred_region
          %s1694 = sand.u32 %s439, 1
          %s1695 = scalar_lea.sflag [#allocation6], %s1694
          %s1696 = sand.u32 %s439, 1
          %s1697 = smul.addr %s1696, 8
          %s1698 = scalar_lea.vmem [#allocation5], %s1697
          %1699 = dma.done %s1695, 128
        $region112: #{decoder_decode.1} parent=99 // pred_fallthru
          _
      $region100: #{decoder_decode.1} parent=5 // pred_fallthru
        _
    $region6: #{decoder_decode.1} parent=1 // loop_footer
      %s34 = sadd.s32 1, %s30
    $region7: #{decoder_decode.1} parent=1 // loop_footer_branch
      %29 = sbr.rel target = $region3
    $region8: #{decoder_decode.1} parent=1 // loop_exit
      _
    %1700 = vsyncpa [#allocation4], 1
    %s1701 = scalar_lea.sflag [#allocation4], 1
    %1702 = vsyncpa %s1701, 1
    %1703 = vsyncpa [#allocation6], 1
    %s1704 = scalar_lea.sflag [#allocation6], 1
    %1705 = vsyncpa %s1704, 1

</llo_original>
